<compile_context>
chip_gen: v7x
topology: tpu7x:2x2x1
jax: 0.10.0
libtpu: 0.0.40
codegen_flags: <defaults>
</compile_context>

<pallas_src>
import functools
import math

import jax
import jax.numpy as jnp
from jax.experimental import pallas as pl
from jax.experimental.pallas import tpu as pltpu


def _round_up(n, m):
    return ((n + m - 1) // m) * m


# ----------------------------- Pallas kernel ------------------------------ #

def bert_mapping_cnn_kernel(x_ref, wa_ref, wb_ref, wc_ref, b_ref, o_ref, *,
                            seq_len):
    """One batch tile per grid step.

    x_ref  : (B_TILE, S_pad, E)  hidden states (compute dtype, e.g. bf16)
    wa_ref : (E, 3C)             tap-0 weights  [w1[0] | w2[0] | w3[0]]
    wb_ref : (E, 2C)             tap-1 weights  [w2[1] | w3[1]]
    wc_ref : (E,  C)             tap-2 weights  [w3[2]]
    b_ref  : (1, 3C)             fused conv biases (f32)
    o_ref  : (B_TILE, 3C)        L2-normalized max-pooled features (f32)
    seq_len: true (unpadded) sequence length S.
    """
    bt, s_pad, e = x_ref.shape
    n_out = wa_ref.shape[-1]          # 3C
    c = n_out // 3
    m = bt * s_pad

    # Fold batch into the matmul M dimension (leading-dim collapse, layout-free).
    x2d = x_ref[...].reshape(m, e)

    # One MXU matmul per tap; total output width 6C (f32 accumulation).
    acc_a = jnp.dot(x2d, wa_ref[...], preferred_element_type=jnp.float32)  # (m, 3C)
    acc_b = jnp.dot(x2d, wb_ref[...], preferred_element_type=jnp.float32)  # (m, 2C)
    acc_c = jnp.dot(x2d, wc_ref[...], preferred_element_type=jnp.float32)  # (m,  C)

    # Align taps in time on the narrow f32 outputs (XLU roll, jnp.roll
    # semantics: shift m-k brings row t+k to row t).  Wrapped rows only reach
    # time positions that are masked below.
    acc_b = pltpu.roll(acc_b, m - 1, axis=0)   # row t <- row t+1
    acc_c = pltpu.roll(acc_c, m - 2, axis=0)   # row t <- row t+2

    a3 = acc_a.reshape(bt, s_pad, n_out)
    b3 = acc_b.reshape(bt, s_pad, 2 * c)
    c3 = acc_c.reshape(bt, s_pad, c)

    # Per-branch pre-activation scores (static, 128-aligned lane slices).
    s1 = a3[:, :, :c]                               # K=1
    s2 = a3[:, :, c:2 * c] + b3[:, :, :c]           # K=2
    s3 = a3[:, :, 2 * c:] + b3[:, :, c:] + c3       # K=3

    # Temporal max with -inf masking of invalid / padded rows.
    # Branch with kernel height K = j + 1 is valid for t < seq_len - j.
    t_ids = jax.lax.broadcasted_iota(jnp.int32, (bt, s_pad, 1), 1)
    neg = jnp.float32(-jnp.inf)
    m1 = jnp.max(jnp.where(t_ids < seq_len, s1, neg), axis=1)        # (bt, C)
    m2 = jnp.max(jnp.where(t_ids < seq_len - 1, s2, neg), axis=1)    # (bt, C)
    m3 = jnp.max(jnp.where(t_ids < seq_len - 2, s3, neg), axis=1)    # (bt, C)

    # Bias + ReLU after the max (ReLU monotone, bias constant over time).
    feat = jnp.concatenate([m1, m2, m3], axis=1) + b_ref[...]        # (bt, 3C)
    feat = jnp.maximum(feat, 0.0)

    # dropout: identity in eval mode.
    # F.normalize(p=2, dim=1): x / max(||x||, eps) == x * rsqrt(max(||x||^2, eps^2))
    sq = jnp.sum(feat * feat, axis=1, keepdims=True)
    inv_norm = jax.lax.rsqrt(jnp.maximum(sq, 1e-24))
    o_ref[...] = (feat * inv_norm).astype(o_ref.dtype)


# --------------------------- host-side wrapper ----------------------------- #

def bert_mapping_cnn(x, w1, w2, w3, biases, *, b_tile=8,
                     compute_dtype=jnp.bfloat16):
    """x: (B, S, E) f32; wK: (K, E, C); biases: (3, C).  Returns (B, 3C) f32."""
    B, S, E = x.shape
    C = w1.shape[-1]
    c3 = 3 * C
    assert S >= 3, "need S >= 3 for the K=3 convolution"
    # Lane-aligned channel groups (real module: C=512).  For general C, pad
    # the channel axis up to a multiple of 128 before fusing.
    assert C % 128 == 0, "C must be a multiple of 128"

    # Pad batch to a multiple of b_tile and seq to a multiple of 16 (clean
    # sublane layout for bf16/f32); padded rows are masked / sliced away.
    b_pad = _round_up(B, b_tile)
    s_pad = _round_up(S, 16)
    xp = x
    if (b_pad, s_pad) != (B, S):
        xp = jnp.pad(x, ((0, b_pad - B), (0, s_pad - S), (0, 0)))
    xp = xp.astype(compute_dtype)

    # Pack tap weights into exactly the columns each tap feeds.
    wa = jnp.concatenate([w1[0], w2[0], w3[0]], axis=1).astype(compute_dtype)  # (E, 3C)
    wb = jnp.concatenate([w2[1], w3[1]], axis=1).astype(compute_dtype)         # (E, 2C)
    wc = w3[2].astype(compute_dtype)                                           # (E,  C)
    bias = biases.reshape(1, c3).astype(jnp.float32)

    kernel = functools.partial(bert_mapping_cnn_kernel, seq_len=S)
    out = pl.pallas_call(
        kernel,
        out_shape=jax.ShapeDtypeStruct((b_pad, c3), jnp.float32),
        grid=(b_pad // b_tile,),
        in_specs=[
            pl.BlockSpec((b_tile, s_pad, E), lambda i: (i, 0, 0)),
            pl.BlockSpec((E, c3), lambda i: (0, 0)),        # constant block
            pl.BlockSpec((E, 2 * C), lambda i: (0, 0)),     # constant block
            pl.BlockSpec((E, C), lambda i: (0, 0)),         # constant block
            pl.BlockSpec((1, c3), lambda i: (0, 0)),        # constant block
        ],
        out_specs=pl.BlockSpec((b_tile, c3), lambda i: (i, 0)),
        compiler_params=pltpu.CompilerParams(
            dimension_semantics=("parallel",)),
    )(xp, wa, wb, wc, bias)
    return out[:B]


# --------------------------- pure-JAX reference ---------------------------- #

def bert_mapping_cnn_ref(x, w1, w2, w3, biases, *, compute_dtype=jnp.bfloat16):
    """Module-faithful reference (conv -> relu -> max-over-time -> cat ->
    L2 normalize), using the same compute-dtype cast as the kernel."""
    B, S, E = x.shape
    xc = x.astype(compute_dtype)
    feats = []
    for K, w, b in ((1, w1, biases[0]), (2, w2, biases[1]), (3, w3, biases[2])):
        wc = w.astype(compute_dtype)
        L = S - K + 1
        c = sum(jnp.einsum("bse,ec->bsc", xc[:, k:k + L, :], wc[k],
                           preferred_element_type=jnp.float32)
                for k in range(K))
        c = c + b[None, None, :].astype(jnp.float32)
        feats.append(jnp.max(jax.nn.relu(c), axis=1))
    feat = jnp.concatenate(feats, axis=1)
    n = jnp.maximum(jnp.linalg.norm(feat, axis=1, keepdims=True), 1e-12)
    return feat / n


# --------------------------------- main ------------------------------------ #

if __name__ == "__main__":
    # Small, module-consistent shapes (real module: E=768, C=512, S~32-128).
    # 3C = 384 is lane-dense (multiple of 128); E = 128 is MXU-depth friendly.
    # B and S deliberately non-aligned to exercise the padding/masking path.
    B, S, E, C = 13, 12, 128, 128
    B_TILE = 8

    key = jax.random.PRNGKey(0)
    kx, k1, k2, k3, kb = jax.random.split(key, 5)

    # Synthetic BERT last-encoder-layer hidden states (see TODO(synk) above).
    x = jax.random.normal(kx, (B, S, E), dtype=jnp.float32)

    # Conv parameters in kernel layout (K, E, C); PyTorch Conv2d weight
    # (C, 1, K, E) maps here via transpose.  Scale ~ kaiming-ish.
    def init_w(k, K):
        bound = 1.0 / math.sqrt(K * E)
        return jax.random.uniform(k, (K, E, C), jnp.float32, -bound, bound)

    w1 = init_w(k1, 1)
    w2 = init_w(k2, 2)
    w3 = init_w(k3, 3)
    biases = jax.random.uniform(kb, (3, C), jnp.float32, -0.05, 0.05)

    out = bert_mapping_cnn(x, w1, w2, w3, biases, b_tile=B_TILE,
                           compute_dtype=jnp.bfloat16)
    out = jax.block_until_ready(out)

    ref = bert_mapping_cnn_ref(x, w1, w2, w3, biases,
                               compute_dtype=jnp.bfloat16)
    assert out.shape == (B, 3 * C)
    assert bool(jnp.allclose(out, ref, atol=1e-4, rtol=1e-4)), \
        "mismatch vs reference"

    print("KERNEL_OK")
</pallas_src>

<mosaic_0001>
module attributes {stable_mosaic.version = 11 : i64} {
  func.func @bert_mapping_cnn_kernel(%arg0: i32, %arg1: memref<8x16x128xbf16, #tpu.memory_space<vmem>>, %arg2: memref<128x384xbf16, #tpu.memory_space<vmem>>, %arg3: memref<128x256xbf16, #tpu.memory_space<vmem>>, %arg4: memref<128x128xbf16, #tpu.memory_space<vmem>>, %arg5: memref<1x384xf32, #tpu.memory_space<vmem>>, %arg6: memref<8x384xf32, #tpu.memory_space<vmem>>) attributes {dimension_semantics = [#tpu.dimension_semantics<parallel>], iteration_bounds = array<i64: 2>, scalar_prefetch = 0 : i64, scratch_operands = 0 : i64, tpu.core_type = #tpu.core_type<tc>, window_params = [{transform_indices = @transform_0, window_bounds = array<i64: 8, 16, 128>}, {pipeline_mode = #tpu.pipeline_mode<synchronous>, transform_indices = @transform_1, window_bounds = array<i64: 128, 384>}, {pipeline_mode = #tpu.pipeline_mode<synchronous>, transform_indices = @transform_2, window_bounds = array<i64: 128, 256>}, {pipeline_mode = #tpu.pipeline_mode<synchronous>, transform_indices = @transform_3, window_bounds = array<i64: 128, 128>}, {pipeline_mode = #tpu.pipeline_mode<synchronous>, transform_indices = @transform_4, window_bounds = array<i64: 1, 384>}, {transform_indices = @transform_5, window_bounds = array<i64: 8, 384>}]} {
    %c0 = arith.constant 0 : index
    %c0_0 = arith.constant 0 : index
    %c0_1 = arith.constant 0 : index
    %0 = vector.load %arg1[%c0, %c0_0, %c0_1] : memref<8x16x128xbf16, #tpu.memory_space<vmem>>, vector<8x16x128xbf16>
    %1 = vector.shape_cast %0 : vector<8x16x128xbf16> to vector<128x128xbf16>
    %c0_2 = arith.constant 0 : index
    %c0_3 = arith.constant 0 : index
    %2 = vector.load %arg2[%c0_2, %c0_3] : memref<128x384xbf16, #tpu.memory_space<vmem>>, vector<128x384xbf16>
    %cst = arith.constant dense<0.000000e+00> : vector<128x384xf32>
    %3 = tpu.matmul %1, %2, %cst {dimension_numbers = #tpu.dot_dimension_numbers<[1], [0], [0], [1], [0, 0, 1, 1], [], []>} : vector<128x128xbf16>, vector<128x384xbf16>, vector<128x384xf32> -> vector<128x384xf32>
    %c0_4 = arith.constant 0 : index
    %c0_5 = arith.constant 0 : index
    %4 = vector.load %arg3[%c0_4, %c0_5] : memref<128x256xbf16, #tpu.memory_space<vmem>>, vector<128x256xbf16>
    %cst_6 = arith.constant dense<0.000000e+00> : vector<128x256xf32>
    %5 = tpu.matmul %1, %4, %cst_6 {dimension_numbers = #tpu.dot_dimension_numbers<[1], [0], [0], [1], [0, 0, 1, 1], [], []>} : vector<128x128xbf16>, vector<128x256xbf16>, vector<128x256xf32> -> vector<128x256xf32>
    %c0_7 = arith.constant 0 : index
    %c0_8 = arith.constant 0 : index
    %6 = vector.load %arg4[%c0_7, %c0_8] : memref<128x128xbf16, #tpu.memory_space<vmem>>, vector<128x128xbf16>
    %cst_9 = arith.constant dense<0.000000e+00> : vector<128x128xf32>
    %7 = tpu.matmul %1, %6, %cst_9 {dimension_numbers = #tpu.dot_dimension_numbers<[1], [0], [0], [1], [0, 0, 1, 1], [], []>} : vector<128x128xbf16>, vector<128x128xbf16>, vector<128x128xf32> -> vector<128x128xf32>
    %c127_i32 = arith.constant 127 : i32
    %8 = tpu.dynamic_rotate %5 by %c127_i32 dim 0 : vector<128x256xf32>, i32 -> vector<128x256xf32>
    %c126_i32 = arith.constant 126 : i32
    %9 = tpu.dynamic_rotate %7 by %c126_i32 dim 0 : vector<128x128xf32>, i32 -> vector<128x128xf32>
    %10 = vector.shape_cast %3 : vector<128x384xf32> to vector<8x16x384xf32>
    %11 = vector.shape_cast %8 : vector<128x256xf32> to vector<8x16x256xf32>
    %12 = vector.shape_cast %9 : vector<128x128xf32> to vector<8x16x128xf32>
    %13 = vector.extract_strided_slice %10 {offsets = [0, 0, 0], sizes = [8, 16, 128], strides = [1, 1, 1]} : vector<8x16x384xf32> to vector<8x16x128xf32>
    %14 = vector.extract_strided_slice %10 {offsets = [0, 0, 128], sizes = [8, 16, 128], strides = [1, 1, 1]} : vector<8x16x384xf32> to vector<8x16x128xf32>
    %15 = vector.extract_strided_slice %11 {offsets = [0, 0, 0], sizes = [8, 16, 128], strides = [1, 1, 1]} : vector<8x16x256xf32> to vector<8x16x128xf32>
    %16 = arith.addf %14, %15 : vector<8x16x128xf32>
    %17 = vector.extract_strided_slice %10 {offsets = [0, 0, 256], sizes = [8, 16, 128], strides = [1, 1, 1]} : vector<8x16x384xf32> to vector<8x16x128xf32>
    %18 = vector.extract_strided_slice %11 {offsets = [0, 0, 128], sizes = [8, 16, 128], strides = [1, 1, 1]} : vector<8x16x256xf32> to vector<8x16x128xf32>
    %19 = arith.addf %17, %18 : vector<8x16x128xf32>
    %20 = arith.addf %19, %12 : vector<8x16x128xf32>
    %21 = tpu.iota {dimensions = array<i32: 1>} : vector<8x16x1xi32>
    %c12_i32 = arith.constant 12 : i32
    %22 = vector.broadcast %c12_i32 : i32 to vector<8x16x1xi32>
    %23 = arith.cmpi slt, %21, %22 : vector<8x16x1xi32>
    %cst_10 = arith.constant 0xFF800000 : f32
    %24 = vector.shape_cast %23 : vector<8x16x1xi1> to vector<8x16x1xi1>
    %25 = vector.broadcast %24 : vector<8x16x1xi1> to vector<8x16x128xi1>
    %26 = vector.broadcast %cst_10 : f32 to vector<8x16x128xf32>
    %27 = arith.select %25, %13, %26 : vector<8x16x128xi1>, vector<8x16x128xf32>
    %cst_11 = arith.constant dense<0xFF800000> : vector<8x128xf32>
    %28 = vector.multi_reduction <maximumf>, %27, %cst_11 [1] : vector<8x16x128xf32> to vector<8x128xf32>
    %c11_i32 = arith.constant 11 : i32
    %29 = vector.broadcast %c11_i32 : i32 to vector<8x16x1xi32>
    %30 = arith.cmpi slt, %21, %29 : vector<8x16x1xi32>
    %cst_12 = arith.constant 0xFF800000 : f32
    %31 = vector.shape_cast %30 : vector<8x16x1xi1> to vector<8x16x1xi1>
    %32 = vector.broadcast %31 : vector<8x16x1xi1> to vector<8x16x128xi1>
    %33 = vector.broadcast %cst_12 : f32 to vector<8x16x128xf32>
    %34 = arith.select %32, %16, %33 : vector<8x16x128xi1>, vector<8x16x128xf32>
    %cst_13 = arith.constant dense<0xFF800000> : vector<8x128xf32>
    %35 = vector.multi_reduction <maximumf>, %34, %cst_13 [1] : vector<8x16x128xf32> to vector<8x128xf32>
    %c10_i32 = arith.constant 10 : i32
    %36 = vector.broadcast %c10_i32 : i32 to vector<8x16x1xi32>
    %37 = arith.cmpi slt, %21, %36 : vector<8x16x1xi32>
    %cst_14 = arith.constant 0xFF800000 : f32
    %38 = vector.shape_cast %37 : vector<8x16x1xi1> to vector<8x16x1xi1>
    %39 = vector.broadcast %38 : vector<8x16x1xi1> to vector<8x16x128xi1>
    %40 = vector.broadcast %cst_14 : f32 to vector<8x16x128xf32>
    %41 = arith.select %39, %20, %40 : vector<8x16x128xi1>, vector<8x16x128xf32>
    %cst_15 = arith.constant dense<0xFF800000> : vector<8x128xf32>
    %42 = vector.multi_reduction <maximumf>, %41, %cst_15 [1] : vector<8x16x128xf32> to vector<8x128xf32>
    %43 = tpu.concatenate %28, %35, %42 in 1 : vector<8x128xf32>, vector<8x128xf32>, vector<8x128xf32> -> vector<8x384xf32>
    %c0_16 = arith.constant 0 : index
    %c0_17 = arith.constant 0 : index
    %44 = vector.load %arg5[%c0_16, %c0_17] : memref<1x384xf32, #tpu.memory_space<vmem>>, vector<1x384xf32>
    %45 = vector.broadcast %44 : vector<1x384xf32> to vector<8x384xf32>
    %46 = arith.addf %43, %45 : vector<8x384xf32>
    %cst_18 = arith.constant 0.000000e+00 : f32
    %47 = vector.broadcast %cst_18 : f32 to vector<8x384xf32>
    %48 = arith.maximumf %46, %47 : vector<8x384xf32>
    %49 = arith.mulf %48, %48 : vector<8x384xf32>
    %cst_19 = arith.constant dense<0.000000e+00> : vector<8xf32>
    %50 = vector.multi_reduction <add>, %49, %cst_19 [1] : vector<8x384xf32> to vector<8xf32>
    %51 = vector.shape_cast %50 : vector<8xf32> to vector<8x1xf32>
    %cst_20 = arith.constant 1.000000e-24 : f32
    %52 = vector.broadcast %cst_20 : f32 to vector<8x1xf32>
    %53 = arith.maximumf %51, %52 : vector<8x1xf32>
    %54 = math.rsqrt %53 : vector<8x1xf32>
    %55 = vector.broadcast %54 : vector<8x1xf32> to vector<8x384xf32>
    %56 = arith.mulf %48, %55 : vector<8x384xf32>
    %c0_21 = arith.constant 0 : index
    %c0_22 = arith.constant 0 : index
    %57 = vector.load %arg6[%c0_21, %c0_22] : memref<8x384xf32, #tpu.memory_space<vmem>>, vector<8x384xf32>
    tpu.vector_store %arg6[%c0_21, %c0_22], %56 {strides = array<i32>} : memref<8x384xf32, #tpu.memory_space<vmem>>, vector<8x384xf32>,
    return
  }
  func.func @transform_0(%arg0: i32) -> (i32, i32, i32) {
    %c0_i32 = arith.constant 0 : i32
    %c0_i32_0 = arith.constant 0 : i32
    %c0_i32_1 = arith.constant 0 : i32
    return %arg0, %c0_i32, %c0_i32_0 : i32, i32, i32
  }
  func.func @transform_1(%arg0: i32) -> (i32, i32) {
    %c0_i32 = arith.constant 0 : i32
    %c0_i32_0 = arith.constant 0 : i32
    %c0_i32_1 = arith.constant 0 : i32
    return %c0_i32, %c0_i32_0 : i32, i32
  }
  func.func @transform_2(%arg0: i32) -> (i32, i32) {
    %c0_i32 = arith.constant 0 : i32
    %c0_i32_0 = arith.constant 0 : i32
    %c0_i32_1 = arith.constant 0 : i32
    return %c0_i32, %c0_i32_0 : i32, i32
  }
  func.func @transform_3(%arg0: i32) -> (i32, i32) {
    %c0_i32 = arith.constant 0 : i32
    %c0_i32_0 = arith.constant 0 : i32
    %c0_i32_1 = arith.constant 0 : i32
    return %c0_i32, %c0_i32_0 : i32, i32
  }
  func.func @transform_4(%arg0: i32) -> (i32, i32) {
    %c0_i32 = arith.constant 0 : i32
    %c0_i32_0 = arith.constant 0 : i32
    %c0_i32_1 = arith.constant 0 : i32
    return %c0_i32, %c0_i32_0 : i32, i32
  }
  func.func @transform_5(%arg0: i32) -> (i32, i32) {
    %c0_i32 = arith.constant 0 : i32
    %c0_i32_0 = arith.constant 0 : i32
    return %arg0, %c0_i32 : i32, i32
  }
}

</mosaic_0001>

<llo_original>
// kernel: tpu_custom_call.1
$region0: #{tpu_custom_call.1}
  #allocation0 [shape = 'u32[]', space=smem, size = 0x4, offset = 0x4, fixed_abs, tag = 'smem constant byte address 0x4 - core index']
  #allocation1 [shape = 'u32[144,128]{1,0:T(1,128)}', space=vmem, size = 0x12000, scoped, tag = 'internal scratch']
  %s0 = inlined_call_operand.hbm [shape: bf16[16,16,128], index: 0, kind: input, shape index: {}]
  %s1 = inlined_call_operand.hbm [shape: bf16[128,384], index: 1, kind: input, shape index: {}]
  %s2 = inlined_call_operand.hbm [shape: bf16[128,256], index: 2, kind: input, shape index: {}]
  %s3 = inlined_call_operand.hbm [shape: bf16[128,128], index: 3, kind: input, shape index: {}]
  %s4 = inlined_call_operand.vmem [shape: f32[1,384], index: 4, kind: input, shape index: {}]
  %s5 = inlined_call_operand.hbm [shape: f32[16,384], index: 5, kind: output, shape index: {}]
  %s6 = sld [smem:[#allocation0]]
  $region69: #{tpu_custom_call.1} parent=0
    _
  %s8 = ssub.s32 1, %s6
  %s9 = scalar_select 0, %s8, %s6
  $region1: #{tpu_custom_call.1} parent=0
    #allocation2 [shape = 'u8[65536]{0}', space=vmem, size = 0x10000, scoped, tag = 'input window, operand 0']
    #allocation3 [shape = 's32[2]{0}', space=sflag, size = 0x8, scoped, tag = 'scoped memory for tpu_custom_call.1']
    #allocation4 [shape = 's32[2]{0}', space=sflag, size = 0x8, scoped, tag = 'scoped memory for tpu_custom_call.1']
    #allocation5 [shape = 'u8[98304]{0}', space=vmem, size = 0x18000, scoped, tag = 'input window, operand 1, single buffered']
    #allocation6 [shape = 's32[1]{0}', space=sflag, size = 0x4, scoped, tag = 'scoped memory for tpu_custom_call.1']
    #allocation7 [shape = 'u8[65536]{0}', space=vmem, size = 0x10000, scoped, tag = 'input window, operand 2, single buffered']
    #allocation8 [shape = 'u8[32768]{0}', space=vmem, size = 0x8000, scoped, tag = 'input window, operand 3, single buffered']
    #allocation9 [shape = 's32[1]{0}', space=sflag, size = 0x4, scoped, tag = 'scoped memory for tpu_custom_call.1']
    #allocation10 [shape = 'u8[24576]{0}', space=vmem, size = 0x6000, scoped, tag = 'output window, operand 0']
    %10 = vsyncpa [#allocation3], 0
    %s11 = scalar_lea.sflag [#allocation3], 1
    %12 = vsyncpa %s11, 0
    %13 = vsyncpa [#allocation6], 0
    %14 = vsyncpa [#allocation9], 0
    %15 = vsyncpa [#allocation4], 0
    %s16 = scalar_lea.sflag [#allocation4], 1
    %17 = vsyncpa %s16, 0
    loop: start=0, step=1, limit=4
    $region2: #{tpu_custom_call.1} parent=1 // loop_pre_header
      _
    $region3: #{tpu_custom_call.1} parent=1 // loop_header
      %s19 = sphi 0, %s23
      %p20 = scmp.ge.s32.totalorder %s19, 4
      %s29 = sphi 0, %s31
      %s32 = sphi 0, %s29
      %s33 = sphi 0, %s32
      %s49 = sphi 0, %s33
      %s53 = sphi 0, %s53
      %s55 = sphi 0, %s53
      %s56 = sphi 0, %s55
      %s70 = sphi 0, %s56
      %s74 = sphi 0, %s74
      %s76 = sphi 0, %s74
      %s77 = sphi 0, %s76
      %s91 = sphi 0, %s77
      %s95 = sphi 0, %s95
      %s97 = sphi 0, %s95
      %s98 = sphi 0, %s97
      %s112 = sphi 0, %s98
      %s116 = sphi 0, %s116
      %s118 = sphi 0, %s116
      %s119 = sphi 0, %s118
      %s133 = sphi 0, %s119
      %s139 = sphi 0, %s141
      %s142 = sphi 0, %s139
      %s143 = sphi 0, %s142
      %s159 = sphi 0, %s143
    $region4: #{tpu_custom_call.1} parent=1 // loop_header_branch
      %22 = sbr.rel (%p20) target = $region8
    $region5: #{tpu_custom_call.1} parent=1 // loop_body
      %s24 = ssub.s32 %s19, 1
      %s25 = ssub.s32 %s19, 2
      %s26 = sadd.s32 %s19, 1
      %s27 = ssub.s32 %s19, %s26
      %p28 = scmp.eq.s32.totalorder %s27, 0
      %s30 = sadd.s32 %s29, 1
      %s31 = scalar_select %p28, %s29, %s30
      %p34 = pneg %p28
      %p35 = scmp.eq.s32.totalorder %s19, 1
      %p36 = por %p34, %p35
      %p37 = scmp.ne.s32.totalorder %s29, %s32
      %p38 = scmp.eq.s32.totalorder %s19, 0
      %p39 = por %p37, %p38
      %p40 = scmp.ne.s32.totalorder %s29, %s32
      %p41 = scmp.eq.s32.totalorder %s24, 1
      %p42 = por %p40, %p41
      %p43 = scmp.ne.s32.totalorder %s32, %s33
      %p44 = scmp.eq.s32.totalorder %s24, 0
      %p45 = por %p43, %p44
      %p46 = scmp.ne.s32.totalorder %s32, %s33
      %p47 = scmp.eq.s32.totalorder %s25, 1
      %p48 = por %p46, %p47
      %p50 = scmp.ne.s32.totalorder %s33, %s49
      %p51 = scmp.eq.s32.totalorder %s25, 0
      %p52 = por %p50, %p51
      %s54 = sadd.s32 %s53, 1
      %p57 = scmp.eq.s32.totalorder %s19, 1
      %p58 = scmp.ne.s32.totalorder %s53, %s55
      %p59 = scmp.eq.s32.totalorder %s19, 0
      %p60 = por %p58, %p59
      %p61 = scmp.ne.s32.totalorder %s53, %s55
      %p62 = scmp.eq.s32.totalorder %s24, 1
      %p63 = por %p61, %p62
      %p64 = scmp.ne.s32.totalorder %s55, %s56
      %p65 = scmp.eq.s32.totalorder %s24, 0
      %p66 = por %p64, %p65
      %p67 = scmp.ne.s32.totalorder %s55, %s56
      %p68 = scmp.eq.s32.totalorder %s25, 1
      %p69 = por %p67, %p68
      %p71 = scmp.ne.s32.totalorder %s56, %s70
      %p72 = scmp.eq.s32.totalorder %s25, 0
      %p73 = por %p71, %p72
      %s75 = sadd.s32 %s74, 1
      %p78 = scmp.eq.s32.totalorder %s19, 1
      %p79 = scmp.ne.s32.totalorder %s74, %s76
      %p80 = scmp.eq.s32.totalorder %s19, 0
      %p81 = por %p79, %p80
      %p82 = scmp.ne.s32.totalorder %s74, %s76
      %p83 = scmp.eq.s32.totalorder %s24, 1
      %p84 = por %p82, %p83
      %p85 = scmp.ne.s32.totalorder %s76, %s77
      %p86 = scmp.eq.s32.totalorder %s24, 0
      %p87 = por %p85, %p86
      %p88 = scmp.ne.s32.totalorder %s76, %s77
      %p89 = scmp.eq.s32.totalorder %s25, 1
      %p90 = por %p88, %p89
      %p92 = scmp.ne.s32.totalorder %s77, %s91
      %p93 = scmp.eq.s32.totalorder %s25, 0
      %p94 = por %p92, %p93
      %s96 = sadd.s32 %s95, 1
      %p99 = scmp.eq.s32.totalorder %s19, 1
      %p100 = scmp.ne.s32.totalorder %s95, %s97
      %p101 = scmp.eq.s32.totalorder %s19, 0
      %p102 = por %p100, %p101
      %p103 = scmp.ne.s32.totalorder %s95, %s97
      %p104 = scmp.eq.s32.totalorder %s24, 1
      %p105 = por %p103, %p104
      %p106 = scmp.ne.s32.totalorder %s97, %s98
      %p107 = scmp.eq.s32.totalorder %s24, 0
      %p108 = por %p106, %p107
      %p109 = scmp.ne.s32.totalorder %s97, %s98
      %p110 = scmp.eq.s32.totalorder %s25, 1
      %p111 = por %p109, %p110
      %p113 = scmp.ne.s32.totalorder %s98, %s112
      %p114 = scmp.eq.s32.totalorder %s25, 0
      %p115 = por %p113, %p114
      %s117 = sadd.s32 %s116, 1
      %p120 = scmp.eq.s32.totalorder %s19, 1
      %p121 = scmp.ne.s32.totalorder %s116, %s118
      %p122 = scmp.eq.s32.totalorder %s19, 0
      %p123 = por %p121, %p122
      %p124 = scmp.ne.s32.totalorder %s116, %s118
      %p125 = scmp.eq.s32.totalorder %s24, 1
      %p126 = por %p124, %p125
      %p127 = scmp.ne.s32.totalorder %s118, %s119
      %p128 = scmp.eq.s32.totalorder %s24, 0
      %p129 = por %p127, %p128
      %p130 = scmp.ne.s32.totalorder %s118, %s119
      %p131 = scmp.eq.s32.totalorder %s25, 1
      %p132 = por %p130, %p131
      %p134 = scmp.ne.s32.totalorder %s119, %s133
      %p135 = scmp.eq.s32.totalorder %s25, 0
      %p136 = por %p134, %p135
      %s137 = ssub.s32 %s19, %s26
      %p138 = scmp.eq.s32.totalorder %s137, 0
      %s140 = sadd.s32 %s139, 1
      %s141 = scalar_select %p138, %s139, %s140
      %p144 = pneg %p138
      %p145 = scmp.eq.s32.totalorder %s19, 1
      %p146 = por %p144, %p145
      %p147 = scmp.ne.s32.totalorder %s139, %s142
      %p148 = scmp.eq.s32.totalorder %s19, 0
      %p149 = por %p147, %p148
      %p150 = scmp.ne.s32.totalorder %s139, %s142
      %p151 = scmp.eq.s32.totalorder %s24, 1
      %p152 = por %p150, %p151
      %p153 = scmp.ne.s32.totalorder %s142, %s143
      %p154 = scmp.eq.s32.totalorder %s24, 0
      %p155 = por %p153, %p154
      %p156 = scmp.ne.s32.totalorder %s142, %s143
      %p157 = scmp.eq.s32.totalorder %s25, 1
      %p158 = por %p156, %p157
      %p160 = scmp.ne.s32.totalorder %s143, %s159
      %p161 = scmp.eq.s32.totalorder %s25, 0
      %p162 = por %p160, %p161
      %p163 = scmp.le.s32.totalorder 1, %s19
      %p164 = scmp.lt.s32.totalorder %s19, 3
      %p165 = pnand %p163, %p164
      %p166 = pneg %p165
      // Predicated region
      $region9: #{tpu_custom_call.1} parent=5 // pred_check
        _
      $region10: #{tpu_custom_call.1} parent=5 // pred_check_branch
        %168 = sbr.rel (%p165) target = $region12
      $region11: #{tpu_custom_call.1} parent=5 // pred_region
        %s169 = ssub.s32 %s19, 1
        // Predicated region
        $region13: #{tpu_custom_call.1} parent=11 // pred_check
          %p170 = pneg %p66
        $region14: #{tpu_custom_call.1} parent=11 // pred_check_branch
          %172 = sbr.rel (%p170) target = $region16
        $region15: #{tpu_custom_call.1} parent=11 // pred_region
          %s174 = ssub.s32 3072, 3072
          %175 = vsyncadd [#allocation6], %s174
          %s176 = sshll.u32 [#allocation5], 4
          %s177 = int_to_ptr.vmem [resolvable:$true] %s176
          %182 = dma.hbm_to_vmem [thread:$0]  %s1, 3072, %s177, [#allocation6], 192, 192, 12
        $region16: #{tpu_custom_call.1} parent=11 // pred_fallthru
          _
        // Predicated region
        $region17: #{tpu_custom_call.1} parent=11 // pred_check
          %p183 = pneg %p87
        $region18: #{tpu_custom_call.1} parent=11 // pred_check_branch
          %185 = sbr.rel (%p183) target = $region20
        $region19: #{tpu_custom_call.1} parent=11 // pred_region
          %s187 = ssub.s32 2048, 2048
          %188 = vsyncadd [#allocation6], %s187
          %s189 = sshll.u32 [#allocation7], 4
          %s190 = int_to_ptr.vmem [resolvable:$true] %s189
          %195 = dma.hbm_to_vmem [thread:$0]  %s2, 2048, %s190, [#allocation6], 128, 128, 8
        $region20: #{tpu_custom_call.1} parent=11 // pred_fallthru
          _
        // Predicated region
        $region21: #{tpu_custom_call.1} parent=11 // pred_check
          %p196 = pneg %p108
        $region22: #{tpu_custom_call.1} parent=11 // pred_check_branch
          %198 = sbr.rel (%p196) target = $region24
        $region23: #{tpu_custom_call.1} parent=11 // pred_region
          %s200 = ssub.s32 1024, 1024
          %201 = vsyncadd [#allocation9], %s200
          %s202 = sshll.u32 [#allocation8], 4
          %s203 = int_to_ptr.vmem [resolvable:$true] %s202
          %208 = dma.hbm_to_vmem [thread:$0]  %s3, 1024, %s203, [#allocation9], 64, 64, 4
        $region24: #{tpu_custom_call.1} parent=11 // pred_fallthru
          _
        // Predicated region
        $region25: #{tpu_custom_call.1} parent=11 // pred_check
          %p209 = pneg %p129
        $region26: #{tpu_custom_call.1} parent=11 // pred_check_branch
          %211 = sbr.rel (%p209) target = $region28
        $region27: #{tpu_custom_call.1} parent=11 // pred_region
          _
        $region28: #{tpu_custom_call.1} parent=11 // pred_fallthru
          _
      $region12: #{tpu_custom_call.1} parent=5 // pred_fallthru
        _
      %p212 = scmp.lt.s32.totalorder %s19, 2
      // Predicated region
      $region29: #{tpu_custom_call.1} parent=5 // pred_check
        %p213 = pneg %p212
      $region30: #{tpu_custom_call.1} parent=5 // pred_check_branch
        %215 = sbr.rel (%p213) target = $region32
      $region31: #{tpu_custom_call.1} parent=5 // pred_region
        // Predicated region
        $region33: #{tpu_custom_call.1} parent=31 // pred_check
          %p216 = pneg %p39
        $region34: #{tpu_custom_call.1} parent=31 // pred_check_branch
          %218 = sbr.rel (%p216) target = $region36
        $region35: #{tpu_custom_call.1} parent=31 // pred_region
          %s219 = sand.u32 %s29, 1
          %s220 = scalar_lea.sflag [#allocation3], %s219
          %s221 = sand.u32 %s29, 1
          %s222 = smul.addr %s221, 64
          %s223 = scalar_lea.vmem [#allocation2], %s222
          %s224 = smul.u32 8, %s19
          %s226 = ssub.s32 1024, 1024
          %227 = vsyncadd %s220, %s226
          %s228 = smul.addr %s224, 2
          %s229 = smul.addr %s228, 64
          %s230 = scalar_lea.hbm %s0, %s229
          %s231 = sshll.u32 %s223, 4
          %s232 = int_to_ptr.vmem [resolvable:$true] %s231
          %237 = dma.hbm_to_vmem [thread:$0]  %s230, 1024, %s232, %s220, 64, 64, 4
        $region36: #{tpu_custom_call.1} parent=31 // pred_fallthru
          _
      $region32: #{tpu_custom_call.1} parent=5 // pred_fallthru
        _
      %p238 = scmp.le.s32.totalorder 1, %s19
      %p239 = scmp.lt.s32.totalorder %s19, 3
      %p240 = pnand %p238, %p239
      %p241 = pneg %p240
      // Predicated region
      $region37: #{tpu_custom_call.1} parent=5 // pred_check
        _
      $region38: #{tpu_custom_call.1} parent=5 // pred_check_branch
        %243 = sbr.rel (%p240) target = $region40
      $region39: #{tpu_custom_call.1} parent=5 // pred_region
        %s244 = ssub.s32 %s19, 1
        %s245 = sand.u32 %s32, 1
        %s246 = scalar_lea.sflag [#allocation3], %s245
        %s247 = sand.u32 %s32, 1
        %s248 = smul.addr %s247, 64
        %s249 = scalar_lea.vmem [#allocation2], %s248
        // Predicated region
        $region41: #{tpu_custom_call.1} parent=39 // pred_check
          %p250 = pneg %p45
        $region42: #{tpu_custom_call.1} parent=39 // pred_check_branch
          %252 = sbr.rel (%p250) target = $region44
        $region43: #{tpu_custom_call.1} parent=39 // pred_region
          %253 = dma.done %s246, 1024
        $region44: #{tpu_custom_call.1} parent=39 // pred_fallthru
          _
        // Predicated region
        $region45: #{tpu_custom_call.1} parent=39 // pred_check
          %p254 = pneg %p66
        $region46: #{tpu_custom_call.1} parent=39 // pred_check_branch
          %256 = sbr.rel (%p254) target = $region48
        $region47: #{tpu_custom_call.1} parent=39 // pred_region
          %257 = dma.done [#allocation6], 3072
        $region48: #{tpu_custom_call.1} parent=39 // pred_fallthru
          _
        // Predicated region
        $region49: #{tpu_custom_call.1} parent=39 // pred_check
          %p258 = pneg %p87
        $region50: #{tpu_custom_call.1} parent=39 // pred_check_branch
          %260 = sbr.rel (%p258) target = $region52
        $region51: #{tpu_custom_call.1} parent=39 // pred_region
          %261 = dma.done [#allocation6], 2048
        $region52: #{tpu_custom_call.1} parent=39 // pred_fallthru
          _
        // Predicated region
        $region53: #{tpu_custom_call.1} parent=39 // pred_check
          %p262 = pneg %p108
        $region54: #{tpu_custom_call.1} parent=39 // pred_check_branch
          %264 = sbr.rel (%p262) target = $region56
        $region55: #{tpu_custom_call.1} parent=39 // pred_region
          %265 = dma.done [#allocation9], 1024
        $region56: #{tpu_custom_call.1} parent=39 // pred_fallthru
          _
        %s266 = sand.u32 %s32, 1
        %s267 = scalar_lea.sflag [#allocation3], %s266
        %s268 = sand.u32 %s32, 1
        %s269 = smul.addr %s268, 64
        %s270 = scalar_lea.vmem [#allocation2], %s269
        %p271 = pneg %p45
        %p272 = pneg %p42
        %p273 = pneg %p66
        %p274 = pneg %p63
        %p275 = pneg %p87
        %p276 = pneg %p84
        %p277 = pneg %p108
        %p278 = pneg %p105
        %p279 = pneg %p129
        %p280 = pneg %p126
        %p281 = pneg %p155
        %p282 = pneg %p152
        %s283 = sand.u32 %s142, 1
        %s284 = scalar_lea.sflag [#allocation4], %s283
        %s285 = sand.u32 %s142, 1
        %s286 = smul.addr %s285, 24
        %s287 = scalar_lea.vmem [#allocation10], %s286
        %s288 = smul.u32 8, %s24
        %v290 = vld [vmem:[%s249] sm:$0xf]
        %v291 = vld [vmem:[%s249 + $0x4] sm:$0xf]
        %v292 = vld [vmem:[%s249 + $0x8] sm:$0xf]
        %v293 = vld [vmem:[%s249 + $0xc] sm:$0xf]
        %v294 = vld [vmem:[%s249 + $0x10] sm:$0xf]
        %v295 = vld [vmem:[%s249 + $0x14] sm:$0xf]
        %v296 = vld [vmem:[%s249 + $0x18] sm:$0xf]
        %v297 = vld [vmem:[%s249 + $0x1c] sm:$0xf]
        %v298 = vld [vmem:[%s249 + $0x20] sm:$0xf]
        %v299 = vld [vmem:[%s249 + $0x24] sm:$0xf]
        %v300 = vld [vmem:[%s249 + $0x28] sm:$0xf]
        %v301 = vld [vmem:[%s249 + $0x2c] sm:$0xf]
        %v302 = vld [vmem:[%s249 + $0x30] sm:$0xf]
        %v303 = vld [vmem:[%s249 + $0x34] sm:$0xf]
        %v304 = vld [vmem:[%s249 + $0x38] sm:$0xf]
        %v305 = vld [vmem:[%s249 + $0x3c] sm:$0xf]
        %v306 = vld [vmem:[#allocation5] sm:$0xff]
        %v307 = vld [vmem:[#allocation5 + $0x8] sm:$0xf]
        %v308 = vld [vmem:[#allocation5 + $0xc] sm:$0xff]
        %v309 = vld [vmem:[#allocation5 + $0x14] sm:$0xf]
        %v310 = vld [vmem:[#allocation5 + $0x18] sm:$0xff]
        %v311 = vld [vmem:[#allocation5 + $0x20] sm:$0xf]
        %v312 = vld [vmem:[#allocation5 + $0x24] sm:$0xff]
        %v313 = vld [vmem:[#allocation5 + $0x2c] sm:$0xf]
        %v314 = vld [vmem:[#allocation5 + $0x30] sm:$0xff]
        %v315 = vld [vmem:[#allocation5 + $0x38] sm:$0xf]
        %v316 = vld [vmem:[#allocation5 + $0x3c] sm:$0xff]
        %v317 = vld [vmem:[#allocation5 + $0x44] sm:$0xf]
        %v318 = vld [vmem:[#allocation5 + $0x48] sm:$0xff]
        %v319 = vld [vmem:[#allocation5 + $0x50] sm:$0xf]
        %v320 = vld [vmem:[#allocation5 + $0x54] sm:$0xff]
        %v321 = vld [vmem:[#allocation5 + $0x5c] sm:$0xf]
        %v322 = vld [vmem:[#allocation5 + $0x60] sm:$0xff]
        %v323 = vld [vmem:[#allocation5 + $0x68] sm:$0xf]
        %v324 = vld [vmem:[#allocation5 + $0x6c] sm:$0xff]
        %v325 = vld [vmem:[#allocation5 + $0x74] sm:$0xf]
        %v326 = vld [vmem:[#allocation5 + $0x78] sm:$0xff]
        %v327 = vld [vmem:[#allocation5 + $0x80] sm:$0xf]
        %v328 = vld [vmem:[#allocation5 + $0x84] sm:$0xff]
        %v329 = vld [vmem:[#allocation5 + $0x8c] sm:$0xf]
        %v330 = vld [vmem:[#allocation5 + $0x90] sm:$0xff]
        %v331 = vld [vmem:[#allocation5 + $0x98] sm:$0xf]
        %v332 = vld [vmem:[#allocation5 + $0x9c] sm:$0xff]
        %v333 = vld [vmem:[#allocation5 + $0xa4] sm:$0xf]
        %v334 = vld [vmem:[#allocation5 + $0xa8] sm:$0xff]
        %v335 = vld [vmem:[#allocation5 + $0xb0] sm:$0xf]
        %v336 = vld [vmem:[#allocation5 + $0xb4] sm:$0xff]
        %v337 = vld [vmem:[#allocation5 + $0xbc] sm:$0xf]
        %v354 = vunpack.c.l.b16 %v290
        %v355 = vunpack.c.l.b16 %v291
        %v356 = vunpack.c.l.b16 %v292
        %v357 = vunpack.c.l.b16 %v293
        %v358 = vunpack.c.l.b16 %v294
        %v359 = vunpack.c.l.b16 %v295
        %v360 = vunpack.c.l.b16 %v296
        %v361 = vunpack.c.l.b16 %v297
        %v362 = vunpack.c.l.b16 %v298
        %v363 = vunpack.c.l.b16 %v299
        %v364 = vunpack.c.l.b16 %v300
        %v365 = vunpack.c.l.b16 %v301
        %v366 = vunpack.c.l.b16 %v302
        %v367 = vunpack.c.l.b16 %v303
        %v368 = vunpack.c.l.b16 %v304
        %v369 = vunpack.c.l.b16 %v305
        %v370 = vpack.c.b16 %v355, %v354
        %v371 = vpack.c.b16 %v357, %v356
        %v372 = vpack.c.b16 %v359, %v358
        %v373 = vpack.c.b16 %v361, %v360
        %v374 = vpack.c.b16 %v363, %v362
        %v375 = vpack.c.b16 %v365, %v364
        %v376 = vpack.c.b16 %v367, %v366
        %v377 = vpack.c.b16 %v369, %v368
        %v418 = vunpack.c.l.b16 %v306
        %v419 = vunpack.c.h.b16 %v306
        %v420 = vunpack.c.l.b16 %v307
        %v421 = vunpack.c.l.b16 %v308
        %v422 = vunpack.c.h.b16 %v308
        %v423 = vunpack.c.l.b16 %v309
        %v424 = vunpack.c.l.b16 %v310
        %v425 = vunpack.c.h.b16 %v310
        %v426 = vunpack.c.l.b16 %v311
        %v427 = vunpack.c.l.b16 %v312
        %v428 = vunpack.c.h.b16 %v312
        %v429 = vunpack.c.l.b16 %v313
        %v430 = vunpack.c.l.b16 %v314
        %v431 = vunpack.c.h.b16 %v314
        %v432 = vunpack.c.l.b16 %v315
        %v433 = vunpack.c.l.b16 %v316
        %v434 = vunpack.c.h.b16 %v316
        %v435 = vunpack.c.l.b16 %v317
        %v436 = vunpack.c.l.b16 %v318
        %v437 = vunpack.c.h.b16 %v318
        %v438 = vunpack.c.l.b16 %v319
        %v439 = vunpack.c.l.b16 %v320
        %v440 = vunpack.c.h.b16 %v320
        %v441 = vunpack.c.l.b16 %v321
        %v442 = vunpack.c.l.b16 %v322
        %v443 = vunpack.c.h.b16 %v322
        %v444 = vunpack.c.l.b16 %v323
        %v445 = vunpack.c.l.b16 %v324
        %v446 = vunpack.c.h.b16 %v324
        %v447 = vunpack.c.l.b16 %v325
        %v448 = vunpack.c.l.b16 %v326
        %v449 = vunpack.c.h.b16 %v326
        %v450 = vunpack.c.l.b16 %v327
        %v451 = vunpack.c.l.b16 %v328
        %v452 = vunpack.c.h.b16 %v328
        %v453 = vunpack.c.l.b16 %v329
        %v454 = vunpack.c.l.b16 %v330
        %v455 = vunpack.c.h.b16 %v330
        %v456 = vunpack.c.l.b16 %v331
        %v457 = vunpack.c.l.b16 %v332
        %v458 = vunpack.c.h.b16 %v332
        %v459 = vunpack.c.l.b16 %v333
        %v460 = vunpack.c.l.b16 %v334
        %v461 = vunpack.c.h.b16 %v334
        %v462 = vunpack.c.l.b16 %v335
        %v463 = vunpack.c.l.b16 %v336
        %v464 = vunpack.c.h.b16 %v336
        %v465 = vunpack.c.l.b16 %v337
        %v466 = vpack.c.b16 %v421, %v418
        %v467 = vpack.c.b16 %v422, %v419
        %v468 = vpack.c.b16 %v423, %v420
        %v469 = vpack.c.b16 %v427, %v424
        %v470 = vpack.c.b16 %v428, %v425
        %v471 = vpack.c.b16 %v429, %v426
        %v472 = vpack.c.b16 %v433, %v430
        %v473 = vpack.c.b16 %v434, %v431
        %v474 = vpack.c.b16 %v435, %v432
        %v475 = vpack.c.b16 %v439, %v436
        %v476 = vpack.c.b16 %v440, %v437
        %v477 = vpack.c.b16 %v441, %v438
        %v478 = vpack.c.b16 %v445, %v442
        %v479 = vpack.c.b16 %v446, %v443
        %v480 = vpack.c.b16 %v447, %v444
        %v481 = vpack.c.b16 %v451, %v448
        %v482 = vpack.c.b16 %v452, %v449
        %v483 = vpack.c.b16 %v453, %v450
        %v484 = vpack.c.b16 %v457, %v454
        %v485 = vpack.c.b16 %v458, %v455
        %v486 = vpack.c.b16 %v459, %v456
        %v487 = vpack.c.b16 %v463, %v460
        %v488 = vpack.c.b16 %v464, %v461
        %v489 = vpack.c.b16 %v465, %v462
        %514 = vmatprep.subr.bf16.mxu0 %v467
        %515 = vmatpush1.bf16.msra.mxu0 %v466
        %516 = vmatprep.subr.bf16.mxu0 %v470
        %517 = vmatpush1.bf16.msra.mxu0 %v469
        %518 = vmatprep.subr.bf16.mxu0 %v473
        %519 = vmatpush1.bf16.msra.mxu0 %v472
        %520 = vmatprep.subr.bf16.mxu0 %v476
        %521 = vmatpush1.bf16.msra.mxu0 %v475
        %522 = vmatprep.subr.bf16.mxu0 %v479
        %523 = vmatpush1.bf16.msra.mxu0 %v478
        %524 = vmatprep.subr.bf16.mxu0 %v482
        %525 = vmatpush1.bf16.msra.mxu0 %v481
        %526 = vmatprep.subr.bf16.mxu0 %v485
        %527 = vmatpush1.bf16.msra.mxu0 %v484
        %528 = vmatprep.subr.bf16.mxu0 %v488
        %529 = vmatpush1.bf16.msra.mxu0 %v487
        %530 = vmatprep.subr.bf16.mxu0 0
        %531 = vmatpush1.bf16.msra.mxu0 0
        %532 = vmatprep.subr.bf16.mxu0 0
        %533 = vmatpush1.bf16.msra.mxu0 0
        %534 = vmatprep.subr.bf16.mxu0 0
        %535 = vmatpush1.bf16.msra.mxu0 0
        %536 = vmatprep.subr.bf16.mxu0 0
        %537 = vmatpush1.bf16.msra.mxu0 0
        %538 = vmatprep.subr.bf16.mxu0 0
        %539 = vmatpush1.bf16.msra.mxu0 0
        %540 = vmatprep.subr.bf16.mxu0 0
        %541 = vmatpush1.bf16.msra.mxu0 0
        %542 = vmatprep.subr.bf16.mxu0 0
        %543 = vmatpush1.bf16.msra.mxu0 0
        %544 = vmatprep.subr.bf16.mxu0 0
        %545 = vmatpush1.bf16.msra.mxu0 0
        %546 = vmatprep.mubr.bf16.mxu0 0
        %547 = vmatmul.mubr.bf16.gmra.mrb[0].mxu0 %v370
        %v548 = vpop.f32.mrb[0].mxu0
        %v549 = vadd.f32 0.0, %v548
        %v550 = vpop.f32.mrb[0].mxu0
        %v551 = vadd.f32 0.0, %v550
        %v552 = vpop.f32.mrb[0].mxu0
        %v553 = vadd.f32 0.0, %v552
        %v554 = vpop.f32.mrb[0].mxu0
        %v555 = vadd.f32 0.0, %v554
        %556 = vmatprep.mubr.bf16.mxu0 0
        %557 = vmatmul.mubr.bf16.gmra.mrb[0].mxu0 %v371
        %v558 = vpop.f32.mrb[0].mxu0
        %v559 = vadd.f32 0.0, %v558
        %v560 = vpop.f32.mrb[0].mxu0
        %v561 = vadd.f32 0.0, %v560
        %v562 = vpop.f32.mrb[0].mxu0
        %v563 = vadd.f32 0.0, %v562
        %v564 = vpop.f32.mrb[0].mxu0
        %v565 = vadd.f32 0.0, %v564
        %566 = vmatprep.mubr.bf16.mxu0 0
        %567 = vmatmul.mubr.bf16.gmra.mrb[0].mxu0 %v372
        %v568 = vpop.f32.mrb[0].mxu0
        %v569 = vadd.f32 0.0, %v568
        %v570 = vpop.f32.mrb[0].mxu0
        %v571 = vadd.f32 0.0, %v570
        %v572 = vpop.f32.mrb[0].mxu0
        %v573 = vadd.f32 0.0, %v572
        %v574 = vpop.f32.mrb[0].mxu0
        %v575 = vadd.f32 0.0, %v574
        %576 = vmatprep.mubr.bf16.mxu0 0
        %577 = vmatmul.mubr.bf16.gmra.mrb[0].mxu0 %v373
        %v578 = vpop.f32.mrb[0].mxu0
        %v579 = vadd.f32 0.0, %v578
        %v580 = vpop.f32.mrb[0].mxu0
        %v581 = vadd.f32 0.0, %v580
        %v582 = vpop.f32.mrb[0].mxu0
        %v583 = vadd.f32 0.0, %v582
        %v584 = vpop.f32.mrb[0].mxu0
        %v585 = vadd.f32 0.0, %v584
        %586 = vmatprep.mubr.bf16.mxu0 0
        %587 = vmatmul.mubr.bf16.gmra.mrb[0].mxu0 %v374
        %v588 = vpop.f32.mrb[0].mxu0
        %v589 = vadd.f32 0.0, %v588
        %v590 = vpop.f32.mrb[0].mxu0
        %v591 = vadd.f32 0.0, %v590
        %v592 = vpop.f32.mrb[0].mxu0
        %v593 = vadd.f32 0.0, %v592
        %v594 = vpop.f32.mrb[0].mxu0
        %v595 = vadd.f32 0.0, %v594
        %596 = vmatprep.mubr.bf16.mxu0 0
        %597 = vmatmul.mubr.bf16.gmra.mrb[0].mxu0 %v375
        %v598 = vpop.f32.mrb[0].mxu0
        %v599 = vadd.f32 0.0, %v598
        %v600 = vpop.f32.mrb[0].mxu0
        %v601 = vadd.f32 0.0, %v600
        %v602 = vpop.f32.mrb[0].mxu0
        %v603 = vadd.f32 0.0, %v602
        %v604 = vpop.f32.mrb[0].mxu0
        %v605 = vadd.f32 0.0, %v604
        %606 = vmatprep.mubr.bf16.mxu0 0
        %607 = vmatmul.mubr.bf16.gmra.mrb[0].mxu0 %v376
        %v608 = vpop.f32.mrb[0].mxu0
        %v609 = vadd.f32 0.0, %v608
        %v610 = vpop.f32.mrb[0].mxu0
        %v611 = vadd.f32 0.0, %v610
        %v612 = vpop.f32.mrb[0].mxu0
        %v613 = vadd.f32 0.0, %v612
        %v614 = vpop.f32.mrb[0].mxu0
        %v615 = vadd.f32 0.0, %v614
        %616 = vmatprep.mubr.bf16.mxu0 0
        %617 = vmatmul.mubr.bf16.gmra.mrb[0].mxu0 %v377
        %v618 = vpop.f32.mrb[0].mxu0
        %v619 = vadd.f32 0.0, %v618
        %v620 = vpop.f32.mrb[0].mxu0
        %v621 = vadd.f32 0.0, %v620
        %v622 = vpop.f32.mrb[0].mxu0
        %v623 = vadd.f32 0.0, %v622
        %v624 = vpop.f32.mrb[0].mxu0
        %v625 = vadd.f32 0.0, %v624
        %626 = vdwg.mxu0
        %627 = vmatprep.subr.bf16.mxu0 0
        %628 = vmatpush1.bf16.msra.mxu0 %v468
        %629 = vmatprep.subr.bf16.mxu0 0
        %630 = vmatpush1.bf16.msra.mxu0 %v471
        %631 = vmatprep.subr.bf16.mxu0 0
        %632 = vmatpush1.bf16.msra.mxu0 %v474
        %633 = vmatprep.subr.bf16.mxu0 0
        %634 = vmatpush1.bf16.msra.mxu0 %v477
        %635 = vmatprep.subr.bf16.mxu0 0
        %636 = vmatpush1.bf16.msra.mxu0 %v480
        %637 = vmatprep.subr.bf16.mxu0 0
        %638 = vmatpush1.bf16.msra.mxu0 %v483
        %639 = vmatprep.subr.bf16.mxu0 0
        %640 = vmatpush1.bf16.msra.mxu0 %v486
        %641 = vmatprep.subr.bf16.mxu0 0
        %642 = vmatpush1.bf16.msra.mxu0 %v489
        %643 = vmatprep.subr.bf16.mxu0 0
        %644 = vmatpush1.bf16.msra.mxu0 0
        %645 = vmatprep.subr.bf16.mxu0 0
        %646 = vmatpush1.bf16.msra.mxu0 0
        %647 = vmatprep.subr.bf16.mxu0 0
        %648 = vmatpush1.bf16.msra.mxu0 0
        %649 = vmatprep.subr.bf16.mxu0 0
        %650 = vmatpush1.bf16.msra.mxu0 0
        %651 = vmatprep.subr.bf16.mxu0 0
        %652 = vmatpush1.bf16.msra.mxu0 0
        %653 = vmatprep.subr.bf16.mxu0 0
        %654 = vmatpush1.bf16.msra.mxu0 0
        %655 = vmatprep.subr.bf16.mxu0 0
        %656 = vmatpush1.bf16.msra.mxu0 0
        %657 = vmatprep.subr.bf16.mxu0 0
        %658 = vmatpush1.bf16.msra.mxu0 0
        %659 = vmatprep.mubr.bf16.mxu0 0
        %660 = vmatmul.mubr.bf16.gmra.mrb[0].mxu0 %v370
        %v661 = vpop.f32.mrb[0].mxu0
        %v662 = vadd.f32 0.0, %v661
        %v663 = vpop.f32.mrb[0].mxu0
        %v664 = vpop.f32.mrb[0].mxu0
        %v665 = vadd.f32 0.0, %v664
        %v666 = vpop.f32.mrb[0].mxu0
        %667 = vmatprep.mubr.bf16.mxu0 0
        %668 = vmatmul.mubr.bf16.gmra.mrb[0].mxu0 %v371
        %v669 = vpop.f32.mrb[0].mxu0
        %v670 = vadd.f32 0.0, %v669
        %v671 = vpop.f32.mrb[0].mxu0
        %v672 = vpop.f32.mrb[0].mxu0
        %v673 = vadd.f32 0.0, %v672
        %v674 = vpop.f32.mrb[0].mxu0
        %675 = vmatprep.mubr.bf16.mxu0 0
        %676 = vmatmul.mubr.bf16.gmra.mrb[0].mxu0 %v372
        %v677 = vpop.f32.mrb[0].mxu0
        %v678 = vadd.f32 0.0, %v677
        %v679 = vpop.f32.mrb[0].mxu0
        %v680 = vpop.f32.mrb[0].mxu0
        %v681 = vadd.f32 0.0, %v680
        %v682 = vpop.f32.mrb[0].mxu0
        %683 = vmatprep.mubr.bf16.mxu0 0
        %684 = vmatmul.mubr.bf16.gmra.mrb[0].mxu0 %v373
        %v685 = vpop.f32.mrb[0].mxu0
        %v686 = vadd.f32 0.0, %v685
        %v687 = vpop.f32.mrb[0].mxu0
        %v688 = vpop.f32.mrb[0].mxu0
        %v689 = vadd.f32 0.0, %v688
        %v690 = vpop.f32.mrb[0].mxu0
        %691 = vmatprep.mubr.bf16.mxu0 0
        %692 = vmatmul.mubr.bf16.gmra.mrb[0].mxu0 %v374
        %v693 = vpop.f32.mrb[0].mxu0
        %v694 = vadd.f32 0.0, %v693
        %v695 = vpop.f32.mrb[0].mxu0
        %v696 = vpop.f32.mrb[0].mxu0
        %v697 = vadd.f32 0.0, %v696
        %v698 = vpop.f32.mrb[0].mxu0
        %699 = vmatprep.mubr.bf16.mxu0 0
        %700 = vmatmul.mubr.bf16.gmra.mrb[0].mxu0 %v375
        %v701 = vpop.f32.mrb[0].mxu0
        %v702 = vadd.f32 0.0, %v701
        %v703 = vpop.f32.mrb[0].mxu0
        %v704 = vpop.f32.mrb[0].mxu0
        %v705 = vadd.f32 0.0, %v704
        %v706 = vpop.f32.mrb[0].mxu0
        %707 = vmatprep.mubr.bf16.mxu0 0
        %708 = vmatmul.mubr.bf16.gmra.mrb[0].mxu0 %v376
        %v709 = vpop.f32.mrb[0].mxu0
        %v710 = vadd.f32 0.0, %v709
        %v711 = vpop.f32.mrb[0].mxu0
        %v712 = vpop.f32.mrb[0].mxu0
        %v713 = vadd.f32 0.0, %v712
        %v714 = vpop.f32.mrb[0].mxu0
        %715 = vmatprep.mubr.bf16.mxu0 0
        %716 = vmatmul.mubr.bf16.gmra.mrb[0].mxu0 %v377
        %v717 = vpop.f32.mrb[0].mxu0
        %v718 = vadd.f32 0.0, %v717
        %v719 = vpop.f32.mrb[0].mxu0
        %v720 = vpop.f32.mrb[0].mxu0
        %v721 = vadd.f32 0.0, %v720
        %v722 = vpop.f32.mrb[0].mxu0
        %723 = vdwg.mxu0
        %v724 = vld [vmem:[#allocation7] sm:$0xff]
        %v725 = vld [vmem:[#allocation7 + $0x8] sm:$0xff]
        %v726 = vld [vmem:[#allocation7 + $0x10] sm:$0xff]
        %v727 = vld [vmem:[#allocation7 + $0x18] sm:$0xff]
        %v728 = vld [vmem:[#allocation7 + $0x20] sm:$0xff]
        %v729 = vld [vmem:[#allocation7 + $0x28] sm:$0xff]
        %v730 = vld [vmem:[#allocation7 + $0x30] sm:$0xff]
        %v731 = vld [vmem:[#allocation7 + $0x38] sm:$0xff]
        %v732 = vld [vmem:[#allocation7 + $0x40] sm:$0xff]
        %v733 = vld [vmem:[#allocation7 + $0x48] sm:$0xff]
        %v734 = vld [vmem:[#allocation7 + $0x50] sm:$0xff]
        %v735 = vld [vmem:[#allocation7 + $0x58] sm:$0xff]
        %v736 = vld [vmem:[#allocation7 + $0x60] sm:$0xff]
        %v737 = vld [vmem:[#allocation7 + $0x68] sm:$0xff]
        %v738 = vld [vmem:[#allocation7 + $0x70] sm:$0xff]
        %v739 = vld [vmem:[#allocation7 + $0x78] sm:$0xff]
        %v756 = vunpack.c.l.b16 %v724
        %v757 = vunpack.c.h.b16 %v724
        %v758 = vunpack.c.l.b16 %v725
        %v759 = vunpack.c.h.b16 %v725
        %v760 = vunpack.c.l.b16 %v726
        %v761 = vunpack.c.h.b16 %v726
        %v762 = vunpack.c.l.b16 %v727
        %v763 = vunpack.c.h.b16 %v727
        %v764 = vunpack.c.l.b16 %v728
        %v765 = vunpack.c.h.b16 %v728
        %v766 = vunpack.c.l.b16 %v729
        %v767 = vunpack.c.h.b16 %v729
        %v768 = vunpack.c.l.b16 %v730
        %v769 = vunpack.c.h.b16 %v730
        %v770 = vunpack.c.l.b16 %v731
        %v771 = vunpack.c.h.b16 %v731
        %v772 = vunpack.c.l.b16 %v732
        %v773 = vunpack.c.h.b16 %v732
        %v774 = vunpack.c.l.b16 %v733
        %v775 = vunpack.c.h.b16 %v733
        %v776 = vunpack.c.l.b16 %v734
        %v777 = vunpack.c.h.b16 %v734
        %v778 = vunpack.c.l.b16 %v735
        %v779 = vunpack.c.h.b16 %v735
        %v780 = vunpack.c.l.b16 %v736
        %v781 = vunpack.c.h.b16 %v736
        %v782 = vunpack.c.l.b16 %v737
        %v783 = vunpack.c.h.b16 %v737
        %v784 = vunpack.c.l.b16 %v738
        %v785 = vunpack.c.h.b16 %v738
        %v786 = vunpack.c.l.b16 %v739
        %v787 = vunpack.c.h.b16 %v739
        %v788 = vpack.c.b16 %v758, %v756
        %v789 = vpack.c.b16 %v759, %v757
        %v790 = vpack.c.b16 %v762, %v760
        %v791 = vpack.c.b16 %v763, %v761
        %v792 = vpack.c.b16 %v766, %v764
        %v793 = vpack.c.b16 %v767, %v765
        %v794 = vpack.c.b16 %v770, %v768
        %v795 = vpack.c.b16 %v771, %v769
        %v796 = vpack.c.b16 %v774, %v772
        %v797 = vpack.c.b16 %v775, %v773
        %v798 = vpack.c.b16 %v778, %v776
        %v799 = vpack.c.b16 %v779, %v777
        %v800 = vpack.c.b16 %v782, %v780
        %v801 = vpack.c.b16 %v783, %v781
        %v802 = vpack.c.b16 %v786, %v784
        %v803 = vpack.c.b16 %v787, %v785
        %820 = vmatprep.subr.bf16.mxu0 %v789
        %821 = vmatpush1.bf16.msra.mxu0 %v788
        %822 = vmatprep.subr.bf16.mxu0 %v791
        %823 = vmatpush1.bf16.msra.mxu0 %v790
        %824 = vmatprep.subr.bf16.mxu0 %v793
        %825 = vmatpush1.bf16.msra.mxu0 %v792
        %826 = vmatprep.subr.bf16.mxu0 %v795
        %827 = vmatpush1.bf16.msra.mxu0 %v794
        %828 = vmatprep.subr.bf16.mxu0 %v797
        %829 = vmatpush1.bf16.msra.mxu0 %v796
        %830 = vmatprep.subr.bf16.mxu0 %v799
        %831 = vmatpush1.bf16.msra.mxu0 %v798
        %832 = vmatprep.subr.bf16.mxu0 %v801
        %833 = vmatpush1.bf16.msra.mxu0 %v800
        %834 = vmatprep.subr.bf16.mxu0 %v803
        %835 = vmatpush1.bf16.msra.mxu0 %v802
        %836 = vmatprep.subr.bf16.mxu0 0
        %837 = vmatpush1.bf16.msra.mxu0 0
        %838 = vmatprep.subr.bf16.mxu0 0
        %839 = vmatpush1.bf16.msra.mxu0 0
        %840 = vmatprep.subr.bf16.mxu0 0
        %841 = vmatpush1.bf16.msra.mxu0 0
        %842 = vmatprep.subr.bf16.mxu0 0
        %843 = vmatpush1.bf16.msra.mxu0 0
        %844 = vmatprep.subr.bf16.mxu0 0
        %845 = vmatpush1.bf16.msra.mxu0 0
        %846 = vmatprep.subr.bf16.mxu0 0
        %847 = vmatpush1.bf16.msra.mxu0 0
        %848 = vmatprep.subr.bf16.mxu0 0
        %849 = vmatpush1.bf16.msra.mxu0 0
        %850 = vmatprep.subr.bf16.mxu0 0
        %851 = vmatpush1.bf16.msra.mxu0 0
        %852 = vmatprep.mubr.bf16.mxu0 0
        %853 = vmatmul.mubr.bf16.gmra.mrb[0].mxu0 %v370
        %v854 = vpop.f32.mrb[0].mxu0
        %v855 = vadd.f32 0.0, %v854
        %v856 = vpop.f32.mrb[0].mxu0
        %v857 = vadd.f32 0.0, %v856
        %v858 = vpop.f32.mrb[0].mxu0
        %v859 = vadd.f32 0.0, %v858
        %v860 = vpop.f32.mrb[0].mxu0
        %v861 = vadd.f32 0.0, %v860
        %862 = vmatprep.mubr.bf16.mxu0 0
        %863 = vmatmul.mubr.bf16.gmra.mrb[0].mxu0 %v371
        %v864 = vpop.f32.mrb[0].mxu0
        %v865 = vadd.f32 0.0, %v864
        %v866 = vpop.f32.mrb[0].mxu0
        %v867 = vadd.f32 0.0, %v866
        %v868 = vpop.f32.mrb[0].mxu0
        %v869 = vadd.f32 0.0, %v868
        %v870 = vpop.f32.mrb[0].mxu0
        %v871 = vadd.f32 0.0, %v870
        %872 = vmatprep.mubr.bf16.mxu0 0
        %873 = vmatmul.mubr.bf16.gmra.mrb[0].mxu0 %v372
        %v874 = vpop.f32.mrb[0].mxu0
        %v875 = vadd.f32 0.0, %v874
        %v876 = vpop.f32.mrb[0].mxu0
        %v877 = vadd.f32 0.0, %v876
        %v878 = vpop.f32.mrb[0].mxu0
        %v879 = vadd.f32 0.0, %v878
        %v880 = vpop.f32.mrb[0].mxu0
        %v881 = vadd.f32 0.0, %v880
        %882 = vmatprep.mubr.bf16.mxu0 0
        %883 = vmatmul.mubr.bf16.gmra.mrb[0].mxu0 %v373
        %v884 = vpop.f32.mrb[0].mxu0
        %v885 = vadd.f32 0.0, %v884
        %v886 = vpop.f32.mrb[0].mxu0
        %v887 = vadd.f32 0.0, %v886
        %v888 = vpop.f32.mrb[0].mxu0
        %v889 = vadd.f32 0.0, %v888
        %v890 = vpop.f32.mrb[0].mxu0
        %v891 = vadd.f32 0.0, %v890
        %892 = vmatprep.mubr.bf16.mxu0 0
        %893 = vmatmul.mubr.bf16.gmra.mrb[0].mxu0 %v374
        %v894 = vpop.f32.mrb[0].mxu0
        %v895 = vadd.f32 0.0, %v894
        %v896 = vpop.f32.mrb[0].mxu0
        %v897 = vadd.f32 0.0, %v896
        %v898 = vpop.f32.mrb[0].mxu0
        %v899 = vadd.f32 0.0, %v898
        %v900 = vpop.f32.mrb[0].mxu0
        %v901 = vadd.f32 0.0, %v900
        %902 = vmatprep.mubr.bf16.mxu0 0
        %903 = vmatmul.mubr.bf16.gmra.mrb[0].mxu0 %v375
        %v904 = vpop.f32.mrb[0].mxu0
        %v905 = vadd.f32 0.0, %v904
        %v906 = vpop.f32.mrb[0].mxu0
        %v907 = vadd.f32 0.0, %v906
        %v908 = vpop.f32.mrb[0].mxu0
        %v909 = vadd.f32 0.0, %v908
        %v910 = vpop.f32.mrb[0].mxu0
        %v911 = vadd.f32 0.0, %v910
        %912 = vmatprep.mubr.bf16.mxu0 0
        %913 = vmatmul.mubr.bf16.gmra.mrb[0].mxu0 %v376
        %v914 = vpop.f32.mrb[0].mxu0
        %v915 = vadd.f32 0.0, %v914
        %v916 = vpop.f32.mrb[0].mxu0
        %v917 = vadd.f32 0.0, %v916
        %v918 = vpop.f32.mrb[0].mxu0
        %v919 = vadd.f32 0.0, %v918
        %v920 = vpop.f32.mrb[0].mxu0
        %v921 = vadd.f32 0.0, %v920
        %922 = vmatprep.mubr.bf16.mxu0 0
        %923 = vmatmul.mubr.bf16.gmra.mrb[0].mxu0 %v377
        %v924 = vpop.f32.mrb[0].mxu0
        %v925 = vadd.f32 0.0, %v924
        %v926 = vpop.f32.mrb[0].mxu0
        %v927 = vadd.f32 0.0, %v926
        %v928 = vpop.f32.mrb[0].mxu0
        %v929 = vadd.f32 0.0, %v928
        %v930 = vpop.f32.mrb[0].mxu0
        %v931 = vadd.f32 0.0, %v930
        %932 = vdwg.mxu0
        %v933 = vld [vmem:[#allocation8] sm:$0xf]
        %v934 = vld [vmem:[#allocation8 + $0x4] sm:$0xf]
        %v935 = vld [vmem:[#allocation8 + $0x8] sm:$0xf]
        %v936 = vld [vmem:[#allocation8 + $0xc] sm:$0xf]
        %v937 = vld [vmem:[#allocation8 + $0x10] sm:$0xf]
        %v938 = vld [vmem:[#allocation8 + $0x14] sm:$0xf]
        %v939 = vld [vmem:[#allocation8 + $0x18] sm:$0xf]
        %v940 = vld [vmem:[#allocation8 + $0x1c] sm:$0xf]
        %v941 = vld [vmem:[#allocation8 + $0x20] sm:$0xf]
        %v942 = vld [vmem:[#allocation8 + $0x24] sm:$0xf]
        %v943 = vld [vmem:[#allocation8 + $0x28] sm:$0xf]
        %v944 = vld [vmem:[#allocation8 + $0x2c] sm:$0xf]
        %v945 = vld [vmem:[#allocation8 + $0x30] sm:$0xf]
        %v946 = vld [vmem:[#allocation8 + $0x34] sm:$0xf]
        %v947 = vld [vmem:[#allocation8 + $0x38] sm:$0xf]
        %v948 = vld [vmem:[#allocation8 + $0x3c] sm:$0xf]
        %v965 = vunpack.c.l.b16 %v933
        %v966 = vunpack.c.l.b16 %v934
        %v967 = vunpack.c.l.b16 %v935
        %v968 = vunpack.c.l.b16 %v936
        %v969 = vunpack.c.l.b16 %v937
        %v970 = vunpack.c.l.b16 %v938
        %v971 = vunpack.c.l.b16 %v939
        %v972 = vunpack.c.l.b16 %v940
        %v973 = vunpack.c.l.b16 %v941
        %v974 = vunpack.c.l.b16 %v942
        %v975 = vunpack.c.l.b16 %v943
        %v976 = vunpack.c.l.b16 %v944
        %v977 = vunpack.c.l.b16 %v945
        %v978 = vunpack.c.l.b16 %v946
        %v979 = vunpack.c.l.b16 %v947
        %v980 = vunpack.c.l.b16 %v948
        %v981 = vpack.c.b16 %v966, %v965
        %v982 = vpack.c.b16 %v968, %v967
        %v983 = vpack.c.b16 %v970, %v969
        %v984 = vpack.c.b16 %v972, %v971
        %v985 = vpack.c.b16 %v974, %v973
        %v986 = vpack.c.b16 %v976, %v975
        %v987 = vpack.c.b16 %v978, %v977
        %v988 = vpack.c.b16 %v980, %v979
        %997 = vmatprep.subr.bf16.mxu0 0
        %998 = vmatpush1.bf16.msra.mxu0 %v981
        %999 = vmatprep.subr.bf16.mxu0 0
        %1000 = vmatpush1.bf16.msra.mxu0 %v982
        %1001 = vmatprep.subr.bf16.mxu0 0
        %1002 = vmatpush1.bf16.msra.mxu0 %v983
        %1003 = vmatprep.subr.bf16.mxu0 0
        %1004 = vmatpush1.bf16.msra.mxu0 %v984
        %1005 = vmatprep.subr.bf16.mxu0 0
        %1006 = vmatpush1.bf16.msra.mxu0 %v985
        %1007 = vmatprep.subr.bf16.mxu0 0
        %1008 = vmatpush1.bf16.msra.mxu0 %v986
        %1009 = vmatprep.subr.bf16.mxu0 0
        %1010 = vmatpush1.bf16.msra.mxu0 %v987
        %1011 = vmatprep.subr.bf16.mxu0 0
        %1012 = vmatpush1.bf16.msra.mxu0 %v988
        %1013 = vmatprep.subr.bf16.mxu0 0
        %1014 = vmatpush1.bf16.msra.mxu0 0
        %1015 = vmatprep.subr.bf16.mxu0 0
        %1016 = vmatpush1.bf16.msra.mxu0 0
        %1017 = vmatprep.subr.bf16.mxu0 0
        %1018 = vmatpush1.bf16.msra.mxu0 0
        %1019 = vmatprep.subr.bf16.mxu0 0
        %1020 = vmatpush1.bf16.msra.mxu0 0
        %1021 = vmatprep.subr.bf16.mxu0 0
        %1022 = vmatpush1.bf16.msra.mxu0 0
        %1023 = vmatprep.subr.bf16.mxu0 0
        %1024 = vmatpush1.bf16.msra.mxu0 0
        %1025 = vmatprep.subr.bf16.mxu0 0
        %1026 = vmatpush1.bf16.msra.mxu0 0
        %1027 = vmatprep.subr.bf16.mxu0 0
        %1028 = vmatpush1.bf16.msra.mxu0 0
        %1029 = vmatprep.mubr.bf16.mxu0 0
        %1030 = vmatmul.mubr.bf16.gmra.mrb[0].mxu0 %v370
        %v1031 = vpop.f32.mrb[0].mxu0
        %v1032 = vadd.f32 0.0, %v1031
        %v1033 = vpop.f32.mrb[0].mxu0
        %v1034 = vpop.f32.mrb[0].mxu0
        %v1035 = vadd.f32 0.0, %v1034
        %v1036 = vpop.f32.mrb[0].mxu0
        %1037 = vmatprep.mubr.bf16.mxu0 0
        %1038 = vmatmul.mubr.bf16.gmra.mrb[0].mxu0 %v371
        %v1039 = vpop.f32.mrb[0].mxu0
        %v1040 = vadd.f32 0.0, %v1039
        %v1041 = vpop.f32.mrb[0].mxu0
        %v1042 = vpop.f32.mrb[0].mxu0
        %v1043 = vadd.f32 0.0, %v1042
        %v1044 = vpop.f32.mrb[0].mxu0
        %1045 = vmatprep.mubr.bf16.mxu0 0
        %1046 = vmatmul.mubr.bf16.gmra.mrb[0].mxu0 %v372
        %v1047 = vpop.f32.mrb[0].mxu0
        %v1048 = vadd.f32 0.0, %v1047
        %v1049 = vpop.f32.mrb[0].mxu0
        %v1050 = vpop.f32.mrb[0].mxu0
        %v1051 = vadd.f32 0.0, %v1050
        %v1052 = vpop.f32.mrb[0].mxu0
        %1053 = vmatprep.mubr.bf16.mxu0 0
        %1054 = vmatmul.mubr.bf16.gmra.mrb[0].mxu0 %v373
        %v1055 = vpop.f32.mrb[0].mxu0
        %v1056 = vadd.f32 0.0, %v1055
        %v1057 = vpop.f32.mrb[0].mxu0
        %v1058 = vpop.f32.mrb[0].mxu0
        %v1059 = vadd.f32 0.0, %v1058
        %v1060 = vpop.f32.mrb[0].mxu0
        %1061 = vmatprep.mubr.bf16.mxu0 0
        %1062 = vmatmul.mubr.bf16.gmra.mrb[0].mxu0 %v374
        %v1063 = vpop.f32.mrb[0].mxu0
        %v1064 = vadd.f32 0.0, %v1063
        %v1065 = vpop.f32.mrb[0].mxu0
        %v1066 = vpop.f32.mrb[0].mxu0
        %v1067 = vadd.f32 0.0, %v1066
        %v1068 = vpop.f32.mrb[0].mxu0
        %1069 = vmatprep.mubr.bf16.mxu0 0
        %1070 = vmatmul.mubr.bf16.gmra.mrb[0].mxu0 %v375
        %v1071 = vpop.f32.mrb[0].mxu0
        %v1072 = vadd.f32 0.0, %v1071
        %v1073 = vpop.f32.mrb[0].mxu0
        %v1074 = vpop.f32.mrb[0].mxu0
        %v1075 = vadd.f32 0.0, %v1074
        %v1076 = vpop.f32.mrb[0].mxu0
        %1077 = vmatprep.mubr.bf16.mxu0 0
        %1078 = vmatmul.mubr.bf16.gmra.mrb[0].mxu0 %v376
        %v1079 = vpop.f32.mrb[0].mxu0
        %v1080 = vadd.f32 0.0, %v1079
        %v1081 = vpop.f32.mrb[0].mxu0
        %v1082 = vpop.f32.mrb[0].mxu0
        %v1083 = vadd.f32 0.0, %v1082
        %v1084 = vpop.f32.mrb[0].mxu0
        %1085 = vmatprep.mubr.bf16.mxu0 0
        %1086 = vmatmul.mubr.bf16.gmra.mrb[0].mxu0 %v377
        %v1087 = vpop.f32.mrb[0].mxu0
        %v1088 = vadd.f32 0.0, %v1087
        %v1089 = vpop.f32.mrb[0].mxu0
        %v1090 = vpop.f32.mrb[0].mxu0
        %v1091 = vadd.f32 0.0, %v1090
        %v1092 = vpop.f32.mrb[0].mxu0
        %1093 = vdwg.mxu0
        %v1094 = vrot.slane %v855, 1
        %v1095 = vrot.slane %v857, 1
        %v1096 = vrot.slane %v859, 1
        %v1097 = vrot.slane %v861, 1
        %v1098 = vrot.slane %v865, 1
        %v1099 = vrot.slane %v867, 1
        %v1100 = vrot.slane %v869, 1
        %v1101 = vrot.slane %v871, 1
        %v1102 = vrot.slane %v875, 1
        %v1103 = vrot.slane %v877, 1
        %v1104 = vrot.slane %v879, 1
        %v1105 = vrot.slane %v881, 1
        %v1106 = vrot.slane %v885, 1
        %v1107 = vrot.slane %v887, 1
        %v1108 = vrot.slane %v889, 1
        %v1109 = vrot.slane %v891, 1
        %v1110 = vrot.slane %v895, 1
        %v1111 = vrot.slane %v897, 1
        %v1112 = vrot.slane %v899, 1
        %v1113 = vrot.slane %v901, 1
        %v1114 = vrot.slane %v905, 1
        %v1115 = vrot.slane %v907, 1
        %v1116 = vrot.slane %v909, 1
        %v1117 = vrot.slane %v911, 1
        %v1118 = vrot.slane %v915, 1
        %v1119 = vrot.slane %v917, 1
        %v1120 = vrot.slane %v919, 1
        %v1121 = vrot.slane %v921, 1
        %v1122 = vrot.slane %v925, 1
        %v1123 = vrot.slane %v927, 1
        %v1124 = vrot.slane %v929, 1
        %v1125 = vrot.slane %v931, 1
        %v1126 = vlaneseq
        %v1127 = vshrl.u32 %v1126, 7
        %vm1128 = vcmp.lt.s32.totalorder %v1127, 7
        %v1129 = vsel %vm1128, %v1122, %v1124
        %v1130 = vsel %vm1128, %v1123, %v1125
        %v1131 = vsel %vm1128, %v1120, %v1122
        %v1132 = vsel %vm1128, %v1121, %v1123
        %v1133 = vsel %vm1128, %v1118, %v1120
        %v1134 = vsel %vm1128, %v1119, %v1121
        %v1135 = vsel %vm1128, %v1116, %v1118
        %v1136 = vsel %vm1128, %v1117, %v1119
        %v1137 = vsel %vm1128, %v1114, %v1116
        %v1138 = vsel %vm1128, %v1115, %v1117
        %v1139 = vsel %vm1128, %v1112, %v1114
        %v1140 = vsel %vm1128, %v1113, %v1115
        %v1141 = vsel %vm1128, %v1110, %v1112
        %v1142 = vsel %vm1128, %v1111, %v1113
        %v1143 = vsel %vm1128, %v1108, %v1110
        %v1144 = vsel %vm1128, %v1109, %v1111
        %v1145 = vsel %vm1128, %v1106, %v1108
        %v1146 = vsel %vm1128, %v1107, %v1109
        %v1147 = vsel %vm1128, %v1104, %v1106
        %v1148 = vsel %vm1128, %v1105, %v1107
        %v1149 = vsel %vm1128, %v1102, %v1104
        %v1150 = vsel %vm1128, %v1103, %v1105
        %v1151 = vsel %vm1128, %v1100, %v1102
        %v1152 = vsel %vm1128, %v1101, %v1103
        %v1153 = vsel %vm1128, %v1098, %v1100
        %v1154 = vsel %vm1128, %v1099, %v1101
        %v1155 = vsel %vm1128, %v1096, %v1098
        %v1156 = vsel %vm1128, %v1097, %v1099
        %v1157 = vsel %vm1128, %v1094, %v1096
        %v1158 = vsel %vm1128, %v1095, %v1097
        %v1159 = vsel %vm1128, %v1124, %v1094
        %v1160 = vsel %vm1128, %v1125, %v1095
        %v1161 = vrot.slane %v1032, 2
        %v1162 = vrot.slane %v1035, 2
        %v1163 = vrot.slane %v1040, 2
        %v1164 = vrot.slane %v1043, 2
        %v1165 = vrot.slane %v1048, 2
        %v1166 = vrot.slane %v1051, 2
        %v1167 = vrot.slane %v1056, 2
        %v1168 = vrot.slane %v1059, 2
        %v1169 = vrot.slane %v1064, 2
        %v1170 = vrot.slane %v1067, 2
        %v1171 = vrot.slane %v1072, 2
        %v1172 = vrot.slane %v1075, 2
        %v1173 = vrot.slane %v1080, 2
        %v1174 = vrot.slane %v1083, 2
        %v1175 = vrot.slane %v1088, 2
        %v1176 = vrot.slane %v1091, 2
        %vm1177 = vcmp.lt.s32.totalorder %v1127, 6
        %v1178 = vsel %vm1177, %v1175, %v1176
        %v1179 = vsel %vm1177, %v1174, %v1175
        %v1180 = vsel %vm1177, %v1173, %v1174
        %v1181 = vsel %vm1177, %v1172, %v1173
        %v1182 = vsel %vm1177, %v1171, %v1172
        %v1183 = vsel %vm1177, %v1170, %v1171
        %v1184 = vsel %vm1177, %v1169, %v1170
        %v1185 = vsel %vm1177, %v1168, %v1169
        %v1186 = vsel %vm1177, %v1167, %v1168
        %v1187 = vsel %vm1177, %v1166, %v1167
        %v1188 = vsel %vm1177, %v1165, %v1166
        %v1189 = vsel %vm1177, %v1164, %v1165
        %v1190 = vsel %vm1177, %v1163, %v1164
        %v1191 = vsel %vm1177, %v1162, %v1163
        %v1192 = vsel %vm1177, %v1161, %v1162
        %v1193 = vsel %vm1177, %v1176, %v1161
        %v1194 = vadd.f32 %v551, %v1157
        %v1195 = vadd.f32 %v555, %v1155
        %v1196 = vadd.f32 %v561, %v1153
        %v1197 = vadd.f32 %v565, %v1151
        %v1198 = vadd.f32 %v571, %v1149
        %v1199 = vadd.f32 %v575, %v1147
        %v1200 = vadd.f32 %v581, %v1145
        %v1201 = vadd.f32 %v585, %v1143
        %v1202 = vadd.f32 %v591, %v1141
        %v1203 = vadd.f32 %v595, %v1139
        %v1204 = vadd.f32 %v601, %v1137
        %v1205 = vadd.f32 %v605, %v1135
        %v1206 = vadd.f32 %v611, %v1133
        %v1207 = vadd.f32 %v615, %v1131
        %v1208 = vadd.f32 %v621, %v1129
        %v1209 = vadd.f32 %v625, %v1159
        %v1210 = vadd.f32 %v662, %v1158
        %v1211 = vadd.f32 %v665, %v1156
        %v1212 = vadd.f32 %v670, %v1154
        %v1213 = vadd.f32 %v673, %v1152
        %v1214 = vadd.f32 %v678, %v1150
        %v1215 = vadd.f32 %v681, %v1148
        %v1216 = vadd.f32 %v686, %v1146
        %v1217 = vadd.f32 %v689, %v1144
        %v1218 = vadd.f32 %v694, %v1142
        %v1219 = vadd.f32 %v697, %v1140
        %v1220 = vadd.f32 %v702, %v1138
        %v1221 = vadd.f32 %v705, %v1136
        %v1222 = vadd.f32 %v710, %v1134
        %v1223 = vadd.f32 %v713, %v1132
        %v1224 = vadd.f32 %v718, %v1130
        %v1225 = vadd.f32 %v721, %v1160
        %v1226 = vadd.f32 %v1210, %v1192
        %v1227 = vadd.f32 %v1211, %v1191
        %v1228 = vadd.f32 %v1212, %v1190
        %v1229 = vadd.f32 %v1213, %v1189
        %v1230 = vadd.f32 %v1214, %v1188
        %v1231 = vadd.f32 %v1215, %v1187
        %v1232 = vadd.f32 %v1216, %v1186
        %v1233 = vadd.f32 %v1217, %v1185
        %v1234 = vadd.f32 %v1218, %v1184
        %v1235 = vadd.f32 %v1219, %v1183
        %v1236 = vadd.f32 %v1220, %v1182
        %v1237 = vadd.f32 %v1221, %v1181
        %v1238 = vadd.f32 %v1222, %v1180
        %v1239 = vadd.f32 %v1223, %v1179
        %v1240 = vadd.f32 %v1224, %v1178
        %v1241 = vadd.f32 %v1225, %v1193
        %v1242 = vadd.s32 %v1127, 8
        %vm1243 = vcmp.lt.s32.totalorder %v1127, 12
        %vm1244 = vcmp.lt.s32.totalorder %v1242, 12
        %v1245 = vsel %vm1243, 1, 0
        %v1246 = vsel %vm1244, 1, 0
        %vm1247 = vcmp.eq.s32.totalorder %v1245, 1
        %vm1248 = vcmp.eq.s32.totalorder %v1246, 1
        %v1249 = vsel %vm1247, %v549, -inf
        %v1250 = vsel %vm1248, %v553, -inf
        %v1251 = vsel %vm1247, %v559, -inf
        %v1252 = vsel %vm1248, %v563, -inf
        %v1253 = vsel %vm1247, %v569, -inf
        %v1254 = vsel %vm1248, %v573, -inf
        %v1255 = vsel %vm1247, %v579, -inf
        %v1256 = vsel %vm1248, %v583, -inf
        %v1257 = vsel %vm1247, %v589, -inf
        %v1258 = vsel %vm1248, %v593, -inf
        %v1259 = vsel %vm1247, %v599, -inf
        %v1260 = vsel %vm1248, %v603, -inf
        %v1261 = vsel %vm1247, %v609, -inf
        %v1262 = vsel %vm1248, %v613, -inf
        %v1263 = vsel %vm1247, %v619, -inf
        %v1264 = vsel %vm1248, %v623, -inf
        %v1265 = vmax.f32 %v1249, %v1250
        %v1266 = vrot.slane %v1265, 4
        %v1267 = vmax.f32 %v1265, %v1266
        %v1268 = vrot.slane %v1267, 2
        %v1269 = vmax.f32 %v1267, %v1268
        %v1270 = vrot.slane %v1269, 1
        %v1271 = vmax.f32 %v1269, %v1270
        %v1272 = vmax.f32 %v1251, %v1252
        %v1273 = vrot.slane %v1272, 4
        %v1274 = vmax.f32 %v1272, %v1273
        %v1275 = vrot.slane %v1274, 2
        %v1276 = vmax.f32 %v1274, %v1275
        %v1277 = vrot.slane %v1276, 1
        %v1278 = vmax.f32 %v1276, %v1277
        %v1279 = vmax.f32 %v1253, %v1254
        %v1280 = vrot.slane %v1279, 4
        %v1281 = vmax.f32 %v1279, %v1280
        %v1282 = vrot.slane %v1281, 2
        %v1283 = vmax.f32 %v1281, %v1282
        %v1284 = vrot.slane %v1283, 1
        %v1285 = vmax.f32 %v1283, %v1284
        %v1286 = vmax.f32 %v1255, %v1256
        %v1287 = vrot.slane %v1286, 4
        %v1288 = vmax.f32 %v1286, %v1287
        %v1289 = vrot.slane %v1288, 2
        %v1290 = vmax.f32 %v1288, %v1289
        %v1291 = vrot.slane %v1290, 1
        %v1292 = vmax.f32 %v1290, %v1291
        %v1293 = vmax.f32 %v1257, %v1258
        %v1294 = vrot.slane %v1293, 4
        %v1295 = vmax.f32 %v1293, %v1294
        %v1296 = vrot.slane %v1295, 2
        %v1297 = vmax.f32 %v1295, %v1296
        %v1298 = vrot.slane %v1297, 1
        %v1299 = vmax.f32 %v1297, %v1298
        %v1300 = vmax.f32 %v1259, %v1260
        %v1301 = vrot.slane %v1300, 4
        %v1302 = vmax.f32 %v1300, %v1301
        %v1303 = vrot.slane %v1302, 2
        %v1304 = vmax.f32 %v1302, %v1303
        %v1305 = vrot.slane %v1304, 1
        %v1306 = vmax.f32 %v1304, %v1305
        %v1307 = vmax.f32 %v1261, %v1262
        %v1308 = vrot.slane %v1307, 4
        %v1309 = vmax.f32 %v1307, %v1308
        %v1310 = vrot.slane %v1309, 2
        %v1311 = vmax.f32 %v1309, %v1310
        %v1312 = vrot.slane %v1311, 1
        %v1313 = vmax.f32 %v1311, %v1312
        %v1314 = vmax.f32 %v1263, %v1264
        %v1315 = vrot.slane %v1314, 4
        %v1316 = vmax.f32 %v1314, %v1315
        %v1317 = vrot.slane %v1316, 2
        %v1318 = vmax.f32 %v1316, %v1317
        %v1319 = vrot.slane %v1318, 1
        %v1320 = vmax.f32 %v1318, %v1319
        %vm1321 = vcmp.lt.s32.totalorder %v1127, 11
        %vm1322 = vcmp.lt.s32.totalorder %v1242, 11
        %v1323 = vsel %vm1321, 1, 0
        %v1324 = vsel %vm1322, 1, 0
        %vm1325 = vcmp.eq.s32.totalorder %v1323, 1
        %vm1326 = vcmp.eq.s32.totalorder %v1324, 1
        %v1327 = vsel %vm1325, %v1194, -inf
        %v1328 = vsel %vm1326, %v1195, -inf
        %v1329 = vsel %vm1325, %v1196, -inf
        %v1330 = vsel %vm1326, %v1197, -inf
        %v1331 = vsel %vm1325, %v1198, -inf
        %v1332 = vsel %vm1326, %v1199, -inf
        %v1333 = vsel %vm1325, %v1200, -inf
        %v1334 = vsel %vm1326, %v1201, -inf
        %v1335 = vsel %vm1325, %v1202, -inf
        %v1336 = vsel %vm1326, %v1203, -inf
        %v1337 = vsel %vm1325, %v1204, -inf
        %v1338 = vsel %vm1326, %v1205, -inf
        %v1339 = vsel %vm1325, %v1206, -inf
        %v1340 = vsel %vm1326, %v1207, -inf
        %v1341 = vsel %vm1325, %v1208, -inf
        %v1342 = vsel %vm1326, %v1209, -inf
        %v1343 = vmax.f32 %v1327, %v1328
        %v1344 = vrot.slane %v1343, 4
        %v1345 = vmax.f32 %v1343, %v1344
        %v1346 = vrot.slane %v1345, 2
        %v1347 = vmax.f32 %v1345, %v1346
        %v1348 = vrot.slane %v1347, 1
        %v1349 = vmax.f32 %v1347, %v1348
        %v1350 = vmax.f32 %v1329, %v1330
        %v1351 = vrot.slane %v1350, 4
        %v1352 = vmax.f32 %v1350, %v1351
        %v1353 = vrot.slane %v1352, 2
        %v1354 = vmax.f32 %v1352, %v1353
        %v1355 = vrot.slane %v1354, 1
        %v1356 = vmax.f32 %v1354, %v1355
        %v1357 = vmax.f32 %v1331, %v1332
        %v1358 = vrot.slane %v1357, 4
        %v1359 = vmax.f32 %v1357, %v1358
        %v1360 = vrot.slane %v1359, 2
        %v1361 = vmax.f32 %v1359, %v1360
        %v1362 = vrot.slane %v1361, 1
        %v1363 = vmax.f32 %v1361, %v1362
        %v1364 = vmax.f32 %v1333, %v1334
        %v1365 = vrot.slane %v1364, 4
        %v1366 = vmax.f32 %v1364, %v1365
        %v1367 = vrot.slane %v1366, 2
        %v1368 = vmax.f32 %v1366, %v1367
        %v1369 = vrot.slane %v1368, 1
        %v1370 = vmax.f32 %v1368, %v1369
        %v1371 = vmax.f32 %v1335, %v1336
        %v1372 = vrot.slane %v1371, 4
        %v1373 = vmax.f32 %v1371, %v1372
        %v1374 = vrot.slane %v1373, 2
        %v1375 = vmax.f32 %v1373, %v1374
        %v1376 = vrot.slane %v1375, 1
        %v1377 = vmax.f32 %v1375, %v1376
        %v1378 = vmax.f32 %v1337, %v1338
        %v1379 = vrot.slane %v1378, 4
        %v1380 = vmax.f32 %v1378, %v1379
        %v1381 = vrot.slane %v1380, 2
        %v1382 = vmax.f32 %v1380, %v1381
        %v1383 = vrot.slane %v1382, 1
        %v1384 = vmax.f32 %v1382, %v1383
        %v1385 = vmax.f32 %v1339, %v1340
        %v1386 = vrot.slane %v1385, 4
        %v1387 = vmax.f32 %v1385, %v1386
        %v1388 = vrot.slane %v1387, 2
        %v1389 = vmax.f32 %v1387, %v1388
        %v1390 = vrot.slane %v1389, 1
        %v1391 = vmax.f32 %v1389, %v1390
        %v1392 = vmax.f32 %v1341, %v1342
        %v1393 = vrot.slane %v1392, 4
        %v1394 = vmax.f32 %v1392, %v1393
        %v1395 = vrot.slane %v1394, 2
        %v1396 = vmax.f32 %v1394, %v1395
        %v1397 = vrot.slane %v1396, 1
        %v1398 = vmax.f32 %v1396, %v1397
        %vm1399 = vcmp.lt.s32.totalorder %v1127, 10
        %vm1400 = vcmp.lt.s32.totalorder %v1242, 10
        %v1401 = vsel %vm1399, 1, 0
        %v1402 = vsel %vm1400, 1, 0
        %vm1403 = vcmp.eq.s32.totalorder %v1401, 1
        %vm1404 = vcmp.eq.s32.totalorder %v1402, 1
        %v1405 = vsel %vm1403, %v1226, -inf
        %v1406 = vsel %vm1404, %v1227, -inf
        %v1407 = vsel %vm1403, %v1228, -inf
        %v1408 = vsel %vm1404, %v1229, -inf
        %v1409 = vsel %vm1403, %v1230, -inf
        %v1410 = vsel %vm1404, %v1231, -inf
        %v1411 = vsel %vm1403, %v1232, -inf
        %v1412 = vsel %vm1404, %v1233, -inf
        %v1413 = vsel %vm1403, %v1234, -inf
        %v1414 = vsel %vm1404, %v1235, -inf
        %v1415 = vsel %vm1403, %v1236, -inf
        %v1416 = vsel %vm1404, %v1237, -inf
        %v1417 = vsel %vm1403, %v1238, -inf
        %v1418 = vsel %vm1404, %v1239, -inf
        %v1419 = vsel %vm1403, %v1240, -inf
        %v1420 = vsel %vm1404, %v1241, -inf
        %v1421 = vmax.f32 %v1405, %v1406
        %v1422 = vrot.slane %v1421, 4
        %v1423 = vmax.f32 %v1421, %v1422
        %v1424 = vrot.slane %v1423, 2
        %v1425 = vmax.f32 %v1423, %v1424
        %v1426 = vrot.slane %v1425, 1
        %v1427 = vmax.f32 %v1425, %v1426
        %v1428 = vmax.f32 %v1407, %v1408
        %v1429 = vrot.slane %v1428, 4
        %v1430 = vmax.f32 %v1428, %v1429
        %v1431 = vrot.slane %v1430, 2
        %v1432 = vmax.f32 %v1430, %v1431
        %v1433 = vrot.slane %v1432, 1
        %v1434 = vmax.f32 %v1432, %v1433
        %v1435 = vmax.f32 %v1409, %v1410
        %v1436 = vrot.slane %v1435, 4
        %v1437 = vmax.f32 %v1435, %v1436
        %v1438 = vrot.slane %v1437, 2
        %v1439 = vmax.f32 %v1437, %v1438
        %v1440 = vrot.slane %v1439, 1
        %v1441 = vmax.f32 %v1439, %v1440
        %v1442 = vmax.f32 %v1411, %v1412
        %v1443 = vrot.slane %v1442, 4
        %v1444 = vmax.f32 %v1442, %v1443
        %v1445 = vrot.slane %v1444, 2
        %v1446 = vmax.f32 %v1444, %v1445
        %v1447 = vrot.slane %v1446, 1
        %v1448 = vmax.f32 %v1446, %v1447
        %v1449 = vmax.f32 %v1413, %v1414
        %v1450 = vrot.slane %v1449, 4
        %v1451 = vmax.f32 %v1449, %v1450
        %v1452 = vrot.slane %v1451, 2
        %v1453 = vmax.f32 %v1451, %v1452
        %v1454 = vrot.slane %v1453, 1
        %v1455 = vmax.f32 %v1453, %v1454
        %v1456 = vmax.f32 %v1415, %v1416
        %v1457 = vrot.slane %v1456, 4
        %v1458 = vmax.f32 %v1456, %v1457
        %v1459 = vrot.slane %v1458, 2
        %v1460 = vmax.f32 %v1458, %v1459
        %v1461 = vrot.slane %v1460, 1
        %v1462 = vmax.f32 %v1460, %v1461
        %v1463 = vmax.f32 %v1417, %v1418
        %v1464 = vrot.slane %v1463, 4
        %v1465 = vmax.f32 %v1463, %v1464
        %v1466 = vrot.slane %v1465, 2
        %v1467 = vmax.f32 %v1465, %v1466
        %v1468 = vrot.slane %v1467, 1
        %v1469 = vmax.f32 %v1467, %v1468
        %v1470 = vmax.f32 %v1419, %v1420
        %v1471 = vrot.slane %v1470, 4
        %v1472 = vmax.f32 %v1470, %v1471
        %v1473 = vrot.slane %v1472, 2
        %v1474 = vmax.f32 %v1472, %v1473
        %v1475 = vrot.slane %v1474, 1
        %v1476 = vmax.f32 %v1474, %v1475
        %vm1485 = vcmask 1041409
        %v1486 = vsel %vm1485, %v1278, %v1271
        %vm1487 = vcmask 1042434
        %v1488 = vsel %vm1487, %v1285, %v1486
        %vm1489 = vcmask 1043459
        %v1490 = vsel %vm1489, %v1292, %v1488
        %vm1491 = vcmask 1044484
        %v1492 = vsel %vm1491, %v1299, %v1490
        %vm1493 = vcmask 1045509
        %v1494 = vsel %vm1493, %v1306, %v1492
        %vm1495 = vcmask 1046534
        %v1496 = vsel %vm1495, %v1313, %v1494
        %vm1497 = vcmask 1047559
        %v1498 = vsel %vm1497, %v1320, %v1496
        %v1508 = vsel %vm1485, %v1356, %v1349
        %v1509 = vsel %vm1487, %v1363, %v1508
        %v1510 = vsel %vm1489, %v1370, %v1509
        %v1511 = vsel %vm1491, %v1377, %v1510
        %v1512 = vsel %vm1493, %v1384, %v1511
        %v1513 = vsel %vm1495, %v1391, %v1512
        %v1514 = vsel %vm1497, %v1398, %v1513
        %v1524 = vsel %vm1485, %v1434, %v1427
        %v1525 = vsel %vm1487, %v1441, %v1524
        %v1526 = vsel %vm1489, %v1448, %v1525
        %v1527 = vsel %vm1491, %v1455, %v1526
        %v1528 = vsel %vm1493, %v1462, %v1527
        %v1529 = vsel %vm1495, %v1469, %v1528
        %v1530 = vsel %vm1497, %v1476, %v1529
        %v1532 = vld [vmem:[%s4] sm:$0x7]
        %v1534 = vlaneseq
        %v1535 = vshrl.u32 %v1534, 7
        %v1536 = vsub.s32 0, %v1535
        %v1537 = vrot.slane %v1532, %v1536
        %v1538 = vlaneseq
        %v1539 = vshrl.u32 %v1538, 7
        %v1540 = vsub.s32 1, %v1539
        %v1541 = vrot.slane %v1532, %v1540
        %v1542 = vlaneseq
        %v1543 = vshrl.u32 %v1542, 7
        %v1544 = vsub.s32 2, %v1543
        %v1545 = vrot.slane %v1532, %v1544
        %v1549 = vadd.f32 %v1498, %v1537
        %v1550 = vadd.f32 %v1514, %v1541
        %v1551 = vadd.f32 %v1530, %v1545
        %v1552 = vmax.f32 %v1549, 0.0
        %v1553 = vmax.f32 %v1550, 0.0
        %v1554 = vmax.f32 %v1551, 0.0
        %v1555 = vmul.f32 %v1552, %v1552
        %v1556 = vmul.f32 %v1553, %v1553
        %v1557 = vmul.f32 %v1554, %v1554
        %v1558 = vadd.f32 %v1555, %v1556
        %v1559 = vadd.f32 %v1558, %v1557
        %1560 = vadd.xlane.f32.xlu0 %v1559
        %v1561 = vpop.xlane.xlu0 %1560
        %v1562 = vmax.f32 %v1561, 1e-24
        %v1563 = vrsqrt.pop %v1562
        %v1564 = vmul.f32 %v1552, %v1563
        %v1565 = vmul.f32 %v1553, %v1563
        %v1566 = vmul.f32 %v1554, %v1563
        %1567 = vst [vmem:[%s287] sm:$0xff] %v1564
        %1568 = vst [vmem:[%s287 + $0x8] sm:$0xff] %v1565
        %1569 = vst [vmem:[%s287 + $0x10] sm:$0xff] %v1566
        %s1570 = sand.u32 %s142, 1
        %s1571 = scalar_lea.sflag [#allocation4], %s1570
        %s1572 = sand.u32 %s142, 1
        %s1573 = smul.addr %s1572, 24
        %s1574 = scalar_lea.vmem [#allocation10], %s1573
        // Predicated region
        $region57: #{tpu_custom_call.1} parent=39 // pred_check
          %p1575 = pneg %p152
        $region58: #{tpu_custom_call.1} parent=39 // pred_check_branch
          %1577 = sbr.rel (%p1575) target = $region60
        $region59: #{tpu_custom_call.1} parent=39 // pred_region
          %s1579 = ssub.s32 384, 384
          %1580 = vsyncadd %s1571, %s1579
          %s1581 = smul.addr %s24, 3
          %s1582 = smul.addr %s1581, 128
          %s1583 = scalar_lea.hbm %s5, %s1582
          %s1585 = sshll.u32 %s1574, 4
          %s1586 = int_to_ptr.vmem [resolvable:$true] %s1585
          %1588 = dma.vmem_to_hbm [thread:$0]  %s1586, 384, %s1583, %s1571
        $region60: #{tpu_custom_call.1} parent=39 // pred_fallthru
          _
      $region40: #{tpu_custom_call.1} parent=5 // pred_fallthru
        _
      %p1589 = scmp.le.s32.totalorder 2, %s19
      // Predicated region
      $region61: #{tpu_custom_call.1} parent=5 // pred_check
        %p1590 = pneg %p1589
      $region62: #{tpu_custom_call.1} parent=5 // pred_check_branch
        %1592 = sbr.rel (%p1590) target = $region64
      $region63: #{tpu_custom_call.1} parent=5 // pred_region
        %s1593 = ssub.s32 %s19, 2
        // Predicated region
        $region65: #{tpu_custom_call.1} parent=63 // pred_check
          %p1594 = pneg %p158
        $region66: #{tpu_custom_call.1} parent=63 // pred_check_branch
          %1596 = sbr.rel (%p1594) target = $region68
        $region67: #{tpu_custom_call.1} parent=63 // pred_region
          %s1597 = sand.u32 %s143, 1
          %s1598 = scalar_lea.sflag [#allocation4], %s1597
          %s1599 = sand.u32 %s143, 1
          %s1600 = smul.addr %s1599, 24
          %s1601 = scalar_lea.vmem [#allocation10], %s1600
          %1602 = dma.done %s1598, 384
        $region68: #{tpu_custom_call.1} parent=63 // pred_fallthru
          _
      $region64: #{tpu_custom_call.1} parent=5 // pred_fallthru
        _
    $region6: #{tpu_custom_call.1} parent=1 // loop_footer
      %s23 = sadd.s32 1, %s19
    $region7: #{tpu_custom_call.1} parent=1 // loop_footer_branch
      %18 = sbr.rel target = $region3
    $region8: #{tpu_custom_call.1} parent=1 // loop_exit
      _
    %1603 = vsyncpa [#allocation3], 1
    %s1604 = scalar_lea.sflag [#allocation3], 1
    %1605 = vsyncpa %s1604, 1
    %1606 = vsyncpa [#allocation6], 1
    %1607 = vsyncpa [#allocation9], 1
    %1608 = vsyncpa [#allocation4], 1
    %s1609 = scalar_lea.sflag [#allocation4], 1
    %1610 = vsyncpa %s1609, 1

</llo_original>
